<compile_context>
chip_gen: v7x
topology: tpu7x:2x2x1
jax: 0.10.0
libtpu: 0.0.40
codegen_flags: <defaults>
</compile_context>

<pallas_src>
import functools

import numpy as np
import jax
import jax.numpy as jnp
from jax.experimental import pallas as pl
from jax.experimental.pallas import tpu as pltpu


# ---------------------------------------------------------------------------
# Host-side helpers (pooling matrix, VMEM planning)
# ---------------------------------------------------------------------------
def _adaptive_pool_matrix(in_size: int, out_size: int) -> np.ndarray:
    """Row matrix M (out, in) s.t. M @ x == torch AdaptiveAvgPool1d(out)(x)."""
    m = np.zeros((out_size, in_size), dtype=np.float32)
    for i in range(out_size):
        start = (i * in_size) // out_size
        end = -(-((i + 1) * in_size) // out_size)  # ceil
        m[i, start:end] = 1.0 / (end - start)
    return m


@functools.lru_cache(maxsize=None)
def _pool_matrix_t_np(h: int, w: int, s: int, hw_pad: int) -> np.ndarray:
    """Transposed 2-D adaptive-avg-pool matrix, zero-padded to hw_pad rows.

    Returns (hw_pad, s*s) with rows >= h*w all-zero so a chunked/cdiv grid can
    read past H*W without changing the math.  Host numpy only (no device
    arrays are cached, so nothing pins HBM across backend resets).
    """
    ph = _adaptive_pool_matrix(h, s)                                   # (S, H)
    pw = _adaptive_pool_matrix(w, s)                                   # (S, W)
    pm = np.einsum("ih,jw->ijhw", ph, pw).reshape(s * s, h * w)        # (S*S, H*W)
    pmt = np.zeros((hw_pad, s * s), dtype=np.float32)
    pmt[: h * w, :] = pm.T
    return pmt


def _round_up(v: int, m: int) -> int:
    return -(-v // m) * m


def _vmem_plan(hw, c, cout, ss, x_itemsize, pm_itemsize, hw_chunk=None):
    """Pick hw_chunk + scoped-VMEM limit from the full kernel working set."""
    try:
        cap = int(pltpu.get_tpu_info().vmem_capacity_bytes)
    except Exception:
        cap = 64 * 1024 * 1024        # v7x per-TC physical VMEM (most conservative)

    c_sub = _round_up(c, 8)
    cout_sub = _round_up(cout, 8)
    ss_lane = _round_up(ss, 128)
    c_lane = _round_up(c, 128)

    # Chunk-independent residents (budget 2 buffers even where we request 1).
    fixed = (2 * cout_sub * c_lane * 4       # folded conv weight (Cout, C) f32
             + 2 * cout_sub * 128 * 4        # shift (Cout, 1) f32
             + 2 * cout_sub * ss_lane * 4    # output block (Cout, SS) f32
             + c_sub * ss_lane * 4)          # pooled accumulator scratch f32

    # Per-H*W-element cost of the two streamed, double-buffered operands.
    per_row = 2 * (c_sub * x_itemsize + ss_lane * pm_itemsize)

    if hw_chunk is None:
        stream_budget = min(24 * 1024 * 1024, cap // 2 - fixed)
        stream_budget = max(stream_budget, per_row * 128)
        max_chunk = max(128, (stream_budget // per_row) // 128 * 128)
        if hw <= max_chunk:
            hw_chunk = hw                    # single full-extent block
        else:
            hw_chunk = max_chunk
            if hw % 128 == 0:
                # Prefer an exact divisor (no masked remainder) if one exists
                # without shrinking the chunk more than 2x.
                d = max_chunk
                while d > max_chunk // 2 and hw % d != 0:
                    d -= 128
                if d > max_chunk // 2:
                    hw_chunk = d
    else:
        assert hw_chunk == hw or hw_chunk % 128 == 0, hw_chunk

    num_k = -(-hw // hw_chunk)
    hw_pad = num_k * hw_chunk
    need = fixed + per_row * hw_chunk
    vmem_limit = min(int(cap * 0.9), max(32 * 1024 * 1024, need * 3 // 2 + (1 << 20)))
    return hw_chunk, num_k, hw_pad, int(vmem_limit)


# ---------------------------------------------------------------------------
# Pallas kernel
# ---------------------------------------------------------------------------
def _erf(x):
    # Abramowitz & Stegun 7.1.26 (max abs err ~1.5e-7); only ops with a
    # guaranteed Mosaic lowering, single exp lands on the EUP slot.
    a1, a2, a3, a4, a5 = 0.254829592, -0.284496736, 1.421413741, -1.453152027, 1.061405429
    p = 0.3275911
    s = jnp.where(x >= 0.0, 1.0, -1.0)
    ax = jnp.abs(x)
    t = 1.0 / (1.0 + p * ax)
    poly = ((((a5 * t + a4) * t + a3) * t + a2) * t + a1) * t
    return s * (1.0 - poly * jnp.exp(-ax * ax))


def _ppm_kernel(x_ref, pm_ref, w_ref, shift_ref, o_ref, pooled_ref, *, hw, hw_chunk):
    # x_ref      : (C, hw_chunk)    native x dtype; one H*W chunk of one sample
    # pm_ref     : (hw_chunk, S*S)  pool matrix chunk (zero rows past H*W)
    # w_ref      : (Cout, C)        f32 conv weight with BN scale folded in
    # shift_ref  : (Cout, 1)        f32 folded BN shift
    # o_ref      : (Cout, S*S)      f32 output block for this sample
    # pooled_ref : (C, S*S)         f32 VMEM accumulator across H*W chunks
    k = pl.program_id(1)

    @pl.when(k == 0)
    def _init():
        pooled_ref[...] = jnp.zeros_like(pooled_ref)

    x = x_ref[...]
    if hw % hw_chunk != 0:
        # Last chunk reads past H*W: select-out the out-of-bounds lanes
        # (NaN-safe, unlike multiplying garbage by the zero pm rows).
        lane = jax.lax.broadcasted_iota(jnp.int32, x.shape, 1)
        x = jnp.where(lane + k * hw_chunk < hw, x, jnp.zeros_like(x))

    # Partial adaptive-avg-pool: (C, hw_chunk) @ (hw_chunk, S*S), f32 accumulation.
    pooled_ref[...] += jnp.dot(x, pm_ref[...], preferred_element_type=jnp.float32)

    @pl.when(k == pl.num_programs(1) - 1)
    def _epilogue():
        # 1x1 conv (BN scale pre-folded) -> BN shift -> exact (erf) GELU.
        z = jnp.dot(w_ref[...], pooled_ref[...], preferred_element_type=jnp.float32)
        z = z + shift_ref[...]
        o_ref[...] = (0.5 * z * (1.0 + _erf(z * 0.7071067811865476))).astype(o_ref.dtype)


# ---------------------------------------------------------------------------
# Wrapper
# ---------------------------------------------------------------------------
_SINGLE_BUFFER_CONSTS = [True]   # flipped off if pl.Buffered(1) is unsupported here


def ppm_block(x_nchw, conv_w, gamma, beta, run_mean, run_var, pool_scale,
              eps=1e-5, hw_chunk=None):
    # TODO(synk): BatchNorm2d is implemented in inference mode (running stats
    # folded into the conv weight / a per-channel shift); training-mode batch
    # statistics are not computed.
    N, C, H, W = map(int, x_nchw.shape)
    S = int(pool_scale)
    SS = S * S
    HW = H * W
    Cout = int(conv_w.shape[0])

    x_dt = x_nchw.dtype
    itemsize = int(np.dtype(x_dt).itemsize)
    hw_chunk, num_k, hw_pad, vmem_limit = _vmem_plan(
        HW, C, Cout, SS, itemsize, itemsize, hw_chunk)

    # Native layout / dtype: metadata-only reshape of contiguous NCHW, no cast.
    x3 = x_nchw.reshape(N, C, HW)
    pmt = jnp.asarray(_pool_matrix_t_np(H, W, S, hw_pad), dtype=x_dt)   # (hw_pad, SS)

    # Fold BN scale into the 1x1 conv weight; keep only the shift for the kernel.
    scale = gamma.astype(jnp.float32) / jnp.sqrt(run_var.astype(jnp.float32) + eps)
    w_folded = conv_w.reshape(Cout, C).astype(jnp.float32) * scale[:, None]     # (Cout, C)
    shift = (beta.astype(jnp.float32)
             - run_mean.astype(jnp.float32) * scale).reshape(Cout, 1)           # (Cout, 1)

    cost = pl.CostEstimate(
        flops=2 * N * (C * HW * SS + Cout * C * SS),
        transcendentals=N * Cout * SS,
        bytes_accessed=(N * HW * C + N * hw_pad * SS) * itemsize   # pm re-fetched per sample
        + (Cout * C + Cout + N * Cout * SS) * 4,
    )

    kernel = functools.partial(_ppm_kernel, hw=HW, hw_chunk=hw_chunk)

    def build(single_buffer_consts):
        const_kwargs = dict(pipeline_mode=pl.Buffered(1)) if single_buffer_consts else {}
        return pl.pallas_call(
            kernel,
            out_shape=jax.ShapeDtypeStruct((N, Cout, SS), jnp.float32),
            grid_spec=pltpu.PrefetchScalarGridSpec(
                num_scalar_prefetch=0,
                grid=(N, num_k),                    # reduction (H*W chunks) axis last
                in_specs=[
                    pl.BlockSpec((None, C, hw_chunk), lambda n, k: (n, 0, k)),
                    pl.BlockSpec((hw_chunk, SS), lambda n, k: (k, 0)),
                    pl.BlockSpec((Cout, C), lambda n, k: (0, 0), **const_kwargs),
                    pl.BlockSpec((Cout, 1), lambda n, k: (0, 0), **const_kwargs),
                ],
                out_specs=pl.BlockSpec((None, Cout, SS), lambda n, k: (n, 0, 0)),
                scratch_shapes=[pltpu.VMEM((C, SS), jnp.float32)],
            ),
            compiler_params=pltpu.CompilerParams(
                dimension_semantics=("parallel", "arbitrary"),
                vmem_limit_bytes=vmem_limit),
            cost_estimate=cost,
        )

    attempts = (True, False) if _SINGLE_BUFFER_CONSTS[0] else (False,)
    out3, last_err = None, None
    for sb in attempts:
        try:
            out3 = jax.block_until_ready(build(sb)(x3, pmt, w_folded, shift))
            _SINGLE_BUFFER_CONSTS[0] = sb
            break
        except Exception as e:       # pl.Buffered(1) unsupported -> default buffering
            last_err = e
    if out3 is None:
        raise last_err

    # (N, Cout, S*S) -> (N, Cout, S, S): pure reshape, no transpose needed.
    return out3.reshape(N, Cout, S, S)


# ---------------------------------------------------------------------------
# Pure-JAX reference (exact f32 inference-mode module semantics)
# ---------------------------------------------------------------------------
def ppm_block_ref(x, conv_w, gamma, beta, run_mean, run_var, pool_scale, eps=1e-5):
    N, C, H, W = x.shape
    S = int(pool_scale)
    ph = jnp.asarray(_adaptive_pool_matrix(H, S))
    pw = jnp.asarray(_adaptive_pool_matrix(W, S))
    pooled = jnp.einsum("sh,tw,nchw->ncst", ph, pw, x.astype(jnp.float32))
    z = jnp.einsum("oc,ncst->nost",
                   conv_w.reshape(conv_w.shape[0], C).astype(jnp.float32), pooled)
    scale = gamma / jnp.sqrt(run_var + eps)
    shift = beta - run_mean * scale
    z = z * scale[None, :, None, None] + shift[None, :, None, None]
    return 0.5 * z * (1.0 + jax.lax.erf(z / jnp.sqrt(2.0)))


# ---------------------------------------------------------------------------
if __name__ == "__main__":
    base_key = jax.random.PRNGKey(0)

    def run_case(tag, N, C_in, C_out, H, W, S, hw_chunk):
        kx, kw = jax.random.split(jax.random.fold_in(base_key, H * 97 + W * 13 + S))
        x = jax.random.normal(kx, (N, C_in, H, W), dtype=jnp.float32)
        conv_w = 0.5 * jax.random.normal(kw, (C_out, C_in, 1, 1), dtype=jnp.float32)
        gamma = 1.0 + 0.1 * jnp.arange(C_out, dtype=jnp.float32)
        beta = 0.05 * jnp.arange(C_out, dtype=jnp.float32)
        run_mean = 0.02 * jnp.arange(C_out, dtype=jnp.float32)
        run_var = 1.0 + 0.03 * jnp.arange(C_out, dtype=jnp.float32)

        out = ppm_block(x, conv_w, gamma, beta, run_mean, run_var, S, hw_chunk=hw_chunk)
        out = jax.block_until_ready(out)
        assert out.shape == (N, C_out, S, S), (tag, out.shape)

        ref = ppm_block_ref(x, conv_w, gamma, beta, run_mean, run_var, S)
        err = float(jnp.max(jnp.abs(out - ref)))
        assert jnp.allclose(out, ref, atol=2e-2, rtol=2e-2), (tag, err)
        return err

    # 1) H*W divisible by 128, forced two reduction chunks (accumulator path).
    run_case("aligned-chunked", 2, 8, 16, 16, 16, 3, hw_chunk=128)
    # 2) H*W = 144 (not a multiple of 128): cdiv grid + in-kernel lane masking.
    run_case("masked-remainder", 2, 8, 16, 12, 12, 2, hw_chunk=128)
    # 3) Automatic chunk selection (single full-extent block at this size).
    run_case("auto-chunk", 1, 8, 16, 16, 16, 3, hw_chunk=None)

    print("KERNEL_OK")
</pallas_src>

<mosaic_0001>
module attributes {stable_mosaic.version = 11 : i64} {
  func.func @_ppm_kernel(%arg0: i32, %arg1: i32, %arg2: memref<1x8x128xf32, #tpu.memory_space<vmem>>, %arg3: memref<128x9xf32, #tpu.memory_space<vmem>>, %arg4: memref<16x8xf32, #tpu.memory_space<vmem>>, %arg5: memref<16x1xf32, #tpu.memory_space<vmem>>, %arg6: memref<1x16x9xf32, #tpu.memory_space<vmem>>, %arg7: memref<8x9xf32, #tpu.memory_space<vmem>>) attributes {dimension_semantics = [#tpu.dimension_semantics<parallel>, #tpu.dimension_semantics<arbitrary>], iteration_bounds = array<i64: 2, 2>, scalar_prefetch = 0 : i64, scratch_operands = 1 : i64, tpu.core_type = #tpu.core_type<tc>, window_params = [{transform_indices = @transform_0, window_bounds = array<i64: 1, 8, 128>}, {transform_indices = @transform_1, window_bounds = array<i64: 128, 9>}, {pipeline_mode = #tpu.pipeline_mode<synchronous>, transform_indices = @transform_2, window_bounds = array<i64: 16, 8>}, {pipeline_mode = #tpu.pipeline_mode<synchronous>, transform_indices = @transform_3, window_bounds = array<i64: 16, 1>}, {transform_indices = @transform_4, window_bounds = array<i64: 1, 16, 9>}]} {
    %c0_i32 = arith.constant 0 : i32
    %0 = arith.cmpi eq, %arg1, %c0_i32 : i32
    %1 = arith.extui %0 : i1 to i32
    %c0_i32_0 = arith.constant 0 : i32
    %2 = arith.cmpi ne, %1, %c0_i32_0 : i32
    scf.if %2 {
      %cst_10 = arith.constant 0.000000e+00 : f32
      %13 = vector.broadcast %cst_10 : f32 to vector<8x9xf32>
      %c0_11 = arith.constant 0 : index
      %c0_12 = arith.constant 0 : index
      %14 = vector.load %arg7[%c0_11, %c0_12] : memref<8x9xf32, #tpu.memory_space<vmem>>, vector<8x9xf32>
      tpu.vector_store %arg7[%c0_11, %c0_12], %13 {strides = array<i32>} : memref<8x9xf32, #tpu.memory_space<vmem>>, vector<8x9xf32>,
    } else {
    }
    %c0 = arith.constant 0 : index
    %c0_1 = arith.constant 0 : index
    %c0_2 = arith.constant 0 : index
    %3 = vector.load %arg2[%c0, %c0_1, %c0_2] : memref<1x8x128xf32, #tpu.memory_space<vmem>>, vector<1x8x128xf32>
    %4 = vector.shape_cast %3 : vector<1x8x128xf32> to vector<8x128xf32>
    %c0_3 = arith.constant 0 : index
    %c0_4 = arith.constant 0 : index
    %5 = vector.load %arg7[%c0_3, %c0_4] : memref<8x9xf32, #tpu.memory_space<vmem>>, vector<8x9xf32>
    %c0_5 = arith.constant 0 : index
    %c0_6 = arith.constant 0 : index
    %6 = vector.load %arg3[%c0_5, %c0_6] : memref<128x9xf32, #tpu.memory_space<vmem>>, vector<128x9xf32>
    %cst = arith.constant dense<0.000000e+00> : vector<8x9xf32>
    %7 = tpu.matmul %4, %6, %cst {dimension_numbers = #tpu.dot_dimension_numbers<[1], [0], [0], [1], [0, 0, 1, 1], [], []>} : vector<8x128xf32>, vector<128x9xf32>, vector<8x9xf32> -> vector<8x9xf32>
    %8 = arith.addf %5, %7 : vector<8x9xf32>
    %c0_7 = arith.constant 0 : index
    %c0_8 = arith.constant 0 : index
    %9 = vector.load %arg7[%c0_7, %c0_8] : memref<8x9xf32, #tpu.memory_space<vmem>>, vector<8x9xf32>
    tpu.vector_store %arg7[%c0_7, %c0_8], %8 {strides = array<i32>} : memref<8x9xf32, #tpu.memory_space<vmem>>, vector<8x9xf32>,
    %c1_i32 = arith.constant 1 : i32
    %10 = arith.cmpi eq, %arg1, %c1_i32 : i32
    %11 = arith.extui %10 : i1 to i32
    %c0_i32_9 = arith.constant 0 : i32
    %12 = arith.cmpi ne, %11, %c0_i32_9 : i32
    scf.if %12 {
      %c0_10 = arith.constant 0 : index
      %c0_11 = arith.constant 0 : index
      %13 = vector.load %arg4[%c0_10, %c0_11] : memref<16x8xf32, #tpu.memory_space<vmem>>, vector<16x8xf32>
      %c0_12 = arith.constant 0 : index
      %c0_13 = arith.constant 0 : index
      %14 = vector.load %arg7[%c0_12, %c0_13] : memref<8x9xf32, #tpu.memory_space<vmem>>, vector<8x9xf32>
      %cst_14 = arith.constant dense<0.000000e+00> : vector<16x9xf32>
      %15 = tpu.matmul %13, %14, %cst_14 {dimension_numbers = #tpu.dot_dimension_numbers<[1], [0], [0], [1], [0, 0, 1, 1], [], []>} : vector<16x8xf32>, vector<8x9xf32>, vector<16x9xf32> -> vector<16x9xf32>
      %c0_15 = arith.constant 0 : index
      %c0_16 = arith.constant 0 : index
      %16 = vector.load %arg5[%c0_15, %c0_16] : memref<16x1xf32, #tpu.memory_space<vmem>>, vector<16x1xf32>
      %17 = vector.broadcast %16 : vector<16x1xf32> to vector<16x9xf32>
      %18 = arith.addf %15, %17 : vector<16x9xf32>
      %cst_17 = arith.constant 5.000000e-01 : f32
      %19 = vector.broadcast %cst_17 : f32 to vector<16x9xf32>
      %20 = arith.mulf %19, %18 : vector<16x9xf32>
      %cst_18 = arith.constant 0.707106769 : f32
      %21 = vector.broadcast %cst_18 : f32 to vector<16x9xf32>
      %22 = arith.mulf %18, %21 : vector<16x9xf32>
      %cst_19 = arith.constant 0.000000e+00 : f32
      %23 = vector.broadcast %cst_19 : f32 to vector<16x9xf32>
      %24 = arith.cmpf oge, %22, %23 : vector<16x9xf32>
      %cst_20 = arith.constant 1.000000e+00 : f32
      %cst_21 = arith.constant -1.000000e+00 : f32
      %25 = vector.broadcast %cst_20 : f32 to vector<16x9xf32>
      %26 = vector.broadcast %cst_21 : f32 to vector<16x9xf32>
      %27 = arith.select %24, %25, %26 : vector<16x9xi1>, vector<16x9xf32>
      %28 = math.absf %22 : vector<16x9xf32>
      %cst_22 = arith.constant 0.327591091 : f32
      %29 = vector.broadcast %cst_22 : f32 to vector<16x9xf32>
      %30 = arith.mulf %29, %28 : vector<16x9xf32>
      %cst_23 = arith.constant 1.000000e+00 : f32
      %31 = vector.broadcast %cst_23 : f32 to vector<16x9xf32>
      %32 = arith.addf %31, %30 : vector<16x9xf32>
      %cst_24 = arith.constant 1.000000e+00 : f32
      %33 = vector.broadcast %cst_24 : f32 to vector<16x9xf32>
      %34 = arith.divf %33, %32 : vector<16x9xf32>
      %cst_25 = arith.constant 1.06140542 : f32
      %35 = vector.broadcast %cst_25 : f32 to vector<16x9xf32>
      %36 = arith.mulf %35, %34 : vector<16x9xf32>
      %cst_26 = arith.constant -1.45315206 : f32
      %37 = vector.broadcast %cst_26 : f32 to vector<16x9xf32>
      %38 = arith.addf %36, %37 : vector<16x9xf32>
      %39 = arith.mulf %38, %34 : vector<16x9xf32>
      %cst_27 = arith.constant 1.42141378 : f32
      %40 = vector.broadcast %cst_27 : f32 to vector<16x9xf32>
      %41 = arith.addf %39, %40 : vector<16x9xf32>
      %42 = arith.mulf %41, %34 : vector<16x9xf32>
      %cst_28 = arith.constant -0.284496725 : f32
      %43 = vector.broadcast %cst_28 : f32 to vector<16x9xf32>
      %44 = arith.addf %42, %43 : vector<16x9xf32>
      %45 = arith.mulf %44, %34 : vector<16x9xf32>
      %cst_29 = arith.constant 0.254829586 : f32
      %46 = vector.broadcast %cst_29 : f32 to vector<16x9xf32>
      %47 = arith.addf %45, %46 : vector<16x9xf32>
      %48 = arith.mulf %47, %34 : vector<16x9xf32>
      %cst_30 = arith.constant 0.000000e+00 : f32
      %49 = vector.broadcast %cst_30 : f32 to vector<16x9xf32>
      %50 = arith.subf %49, %28 : vector<16x9xf32>
      %51 = arith.mulf %50, %28 : vector<16x9xf32>
      %52 = math.exp %51 : vector<16x9xf32>
      %53 = arith.mulf %48, %52 : vector<16x9xf32>
      %cst_31 = arith.constant 1.000000e+00 : f32
      %54 = vector.broadcast %cst_31 : f32 to vector<16x9xf32>
      %55 = arith.subf %54, %53 : vector<16x9xf32>
      %56 = arith.mulf %27, %55 : vector<16x9xf32>
      %cst_32 = arith.constant 1.000000e+00 : f32
      %57 = vector.broadcast %cst_32 : f32 to vector<16x9xf32>
      %58 = arith.addf %57, %56 : vector<16x9xf32>
      %59 = arith.mulf %20, %58 : vector<16x9xf32>
      %c0_33 = arith.constant 0 : index
      %c0_34 = arith.constant 0 : index
      %c0_35 = arith.constant 0 : index
      %60 = vector.load %arg6[%c0_33, %c0_34, %c0_35] : memref<1x16x9xf32, #tpu.memory_space<vmem>>, vector<1x16x9xf32>
      %61 = vector.shape_cast %60 : vector<1x16x9xf32> to vector<16x9xf32>
      %62 = vector.shape_cast %59 : vector<16x9xf32> to vector<1x16x9xf32>
      tpu.vector_store %arg6[%c0_33, %c0_34, %c0_35], %62 {strides = array<i32>} : memref<1x16x9xf32, #tpu.memory_space<vmem>>, vector<1x16x9xf32>,
    } else {
    }
    return
  }
  func.func @transform_0(%arg0: i32, %arg1: i32) -> (i32, i32, i32) {
    %c0_i32 = arith.constant 0 : i32
    %c0_i32_0 = arith.constant 0 : i32
    return %arg0, %c0_i32, %arg1 : i32, i32, i32
  }
  func.func @transform_1(%arg0: i32, %arg1: i32) -> (i32, i32) {
    %c0_i32 = arith.constant 0 : i32
    %c0_i32_0 = arith.constant 0 : i32
    return %arg1, %c0_i32 : i32, i32
  }
  func.func @transform_2(%arg0: i32, %arg1: i32) -> (i32, i32) {
    %c0_i32 = arith.constant 0 : i32
    %c0_i32_0 = arith.constant 0 : i32
    %c0_i32_1 = arith.constant 0 : i32
    return %c0_i32, %c0_i32_0 : i32, i32
  }
  func.func @transform_3(%arg0: i32, %arg1: i32) -> (i32, i32) {
    %c0_i32 = arith.constant 0 : i32
    %c0_i32_0 = arith.constant 0 : i32
    %c0_i32_1 = arith.constant 0 : i32
    return %c0_i32, %c0_i32_0 : i32, i32
  }
  func.func @transform_4(%arg0: i32, %arg1: i32) -> (i32, i32, i32) {
    %c0_i32 = arith.constant 0 : i32
    %c0_i32_0 = arith.constant 0 : i32
    %c0_i32_1 = arith.constant 0 : i32
    return %arg0, %c0_i32, %c0_i32_0 : i32, i32, i32
  }
}

module attributes {stable_mosaic.version = 11 : i64} {
  func.func @_ppm_kernel(%arg0: i32, %arg1: i32, %arg2: memref<1x8x128xf32, #tpu.memory_space<vmem>>, %arg3: memref<128x9xf32, #tpu.memory_space<vmem>>, %arg4: memref<16x8xf32, #tpu.memory_space<vmem>>, %arg5: memref<16x1xf32, #tpu.memory_space<vmem>>, %arg6: memref<1x16x9xf32, #tpu.memory_space<vmem>>, %arg7: memref<8x9xf32, #tpu.memory_space<vmem>>) attributes {dimension_semantics = [#tpu.dimension_semantics<parallel>, #tpu.dimension_semantics<arbitrary>], iteration_bounds = array<i64: 2, 2>, scalar_prefetch = 0 : i64, scratch_operands = 1 : i64, tpu.core_type = #tpu.core_type<tc>, window_params = [{transform_indices = @transform_0, window_bounds = array<i64: 1, 8, 128>}, {transform_indices = @transform_1, window_bounds = array<i64: 128, 9>}, {pipeline_mode = #tpu.pipeline_mode<synchronous>, transform_indices = @transform_2, window_bounds = array<i64: 16, 8>}, {pipeline_mode = #tpu.pipeline_mode<synchronous>, transform_indices = @transform_3, window_bounds = array<i64: 16, 1>}, {transform_indices = @transform_4, window_bounds = array<i64: 1, 16, 9>}]} {
    %c0_i32 = arith.constant 0 : i32
    %0 = arith.cmpi eq, %arg1, %c0_i32 : i32
    %1 = arith.extui %0 : i1 to i32
    %c0_i32_0 = arith.constant 0 : i32
    %2 = arith.cmpi ne, %1, %c0_i32_0 : i32
    scf.if %2 {
      %cst_10 = arith.constant 0.000000e+00 : f32
      %13 = vector.broadcast %cst_10 : f32 to vector<8x9xf32>
      %c0_11 = arith.constant 0 : index
      %c0_12 = arith.constant 0 : index
      %14 = vector.load %arg7[%c0_11, %c0_12] : memref<8x9xf32, #tpu.memory_space<vmem>>, vector<8x9xf32>
      tpu.vector_store %arg7[%c0_11, %c0_12], %13 {strides = array<i32>} : memref<8x9xf32, #tpu.memory_space<vmem>>, vector<8x9xf32>,
    } else {
    }
    %c0 = arith.constant 0 : index
    %c0_1 = arith.constant 0 : index
    %c0_2 = arith.constant 0 : index
    %3 = vector.load %arg2[%c0, %c0_1, %c0_2] : memref<1x8x128xf32, #tpu.memory_space<vmem>>, vector<1x8x128xf32>
    %4 = vector.shape_cast %3 : vector<1x8x128xf32> to vector<8x128xf32>
    %c0_3 = arith.constant 0 : index
    %c0_4 = arith.constant 0 : index
    %5 = vector.load %arg7[%c0_3, %c0_4] : memref<8x9xf32, #tpu.memory_space<vmem>>, vector<8x9xf32>
    %c0_5 = arith.constant 0 : index
    %c0_6 = arith.constant 0 : index
    %6 = vector.load %arg3[%c0_5, %c0_6] : memref<128x9xf32, #tpu.memory_space<vmem>>, vector<128x9xf32>
    %cst = arith.constant dense<0.000000e+00> : vector<8x9xf32>
    %7 = tpu.matmul %4, %6, %cst {dimension_numbers = #tpu.dot_dimension_numbers<[1], [0], [0], [1], [0, 0, 1, 1], [], []>} : vector<8x128xf32>, vector<128x9xf32>, vector<8x9xf32> -> vector<8x9xf32>
    %8 = arith.addf %5, %7 : vector<8x9xf32>
    %c0_7 = arith.constant 0 : index
    %c0_8 = arith.constant 0 : index
    %9 = vector.load %arg7[%c0_7, %c0_8] : memref<8x9xf32, #tpu.memory_space<vmem>>, vector<8x9xf32>
    tpu.vector_store %arg7[%c0_7, %c0_8], %8 {strides = array<i32>} : memref<8x9xf32, #tpu.memory_space<vmem>>, vector<8x9xf32>,
    %c1_i32 = arith.constant 1 : i32
    %10 = arith.cmpi eq, %arg1, %c1_i32 : i32
    %11 = arith.extui %10 : i1 to i32
    %c0_i32_9 = arith.constant 0 : i32
    %12 = arith.cmpi ne, %11, %c0_i32_9 : i32
    scf.if %12 {
      %c0_10 = arith.constant 0 : index
      %c0_11 = arith.constant 0 : index
      %13 = vector.load %arg4[%c0_10, %c0_11] : memref<16x8xf32, #tpu.memory_space<vmem>>, vector<16x8xf32>
      %c0_12 = arith.constant 0 : index
      %c0_13 = arith.constant 0 : index
      %14 = vector.load %arg7[%c0_12, %c0_13] : memref<8x9xf32, #tpu.memory_space<vmem>>, vector<8x9xf32>
      %cst_14 = arith.constant dense<0.000000e+00> : vector<16x9xf32>
      %15 = tpu.matmul %13, %14, %cst_14 {dimension_numbers = #tpu.dot_dimension_numbers<[1], [0], [0], [1], [0, 0, 1, 1], [], []>} : vector<16x8xf32>, vector<8x9xf32>, vector<16x9xf32> -> vector<16x9xf32>
      %c0_15 = arith.constant 0 : index
      %c0_16 = arith.constant 0 : index
      %16 = vector.load %arg5[%c0_15, %c0_16] : memref<16x1xf32, #tpu.memory_space<vmem>>, vector<16x1xf32>
      %17 = vector.broadcast %16 : vector<16x1xf32> to vector<16x9xf32>
      %18 = arith.addf %15, %17 : vector<16x9xf32>
      %cst_17 = arith.constant 5.000000e-01 : f32
      %19 = vector.broadcast %cst_17 : f32 to vector<16x9xf32>
      %20 = arith.mulf %19, %18 : vector<16x9xf32>
      %cst_18 = arith.constant 0.707106769 : f32
      %21 = vector.broadcast %cst_18 : f32 to vector<16x9xf32>
      %22 = arith.mulf %18, %21 : vector<16x9xf32>
      %cst_19 = arith.constant 0.000000e+00 : f32
      %23 = vector.broadcast %cst_19 : f32 to vector<16x9xf32>
      %24 = arith.cmpf oge, %22, %23 : vector<16x9xf32>
      %cst_20 = arith.constant 1.000000e+00 : f32
      %cst_21 = arith.constant -1.000000e+00 : f32
      %25 = vector.broadcast %cst_20 : f32 to vector<16x9xf32>
      %26 = vector.broadcast %cst_21 : f32 to vector<16x9xf32>
      %27 = arith.select %24, %25, %26 : vector<16x9xi1>, vector<16x9xf32>
      %28 = math.absf %22 : vector<16x9xf32>
      %cst_22 = arith.constant 0.327591091 : f32
      %29 = vector.broadcast %cst_22 : f32 to vector<16x9xf32>
      %30 = arith.mulf %29, %28 : vector<16x9xf32>
      %cst_23 = arith.constant 1.000000e+00 : f32
      %31 = vector.broadcast %cst_23 : f32 to vector<16x9xf32>
      %32 = arith.addf %31, %30 : vector<16x9xf32>
      %cst_24 = arith.constant 1.000000e+00 : f32
      %33 = vector.broadcast %cst_24 : f32 to vector<16x9xf32>
      %34 = arith.divf %33, %32 : vector<16x9xf32>
      %cst_25 = arith.constant 1.06140542 : f32
      %35 = vector.broadcast %cst_25 : f32 to vector<16x9xf32>
      %36 = arith.mulf %35, %34 : vector<16x9xf32>
      %cst_26 = arith.constant -1.45315206 : f32
      %37 = vector.broadcast %cst_26 : f32 to vector<16x9xf32>
      %38 = arith.addf %36, %37 : vector<16x9xf32>
      %39 = arith.mulf %38, %34 : vector<16x9xf32>
      %cst_27 = arith.constant 1.42141378 : f32
      %40 = vector.broadcast %cst_27 : f32 to vector<16x9xf32>
      %41 = arith.addf %39, %40 : vector<16x9xf32>
      %42 = arith.mulf %41, %34 : vector<16x9xf32>
      %cst_28 = arith.constant -0.284496725 : f32
      %43 = vector.broadcast %cst_28 : f32 to vector<16x9xf32>
      %44 = arith.addf %42, %43 : vector<16x9xf32>
      %45 = arith.mulf %44, %34 : vector<16x9xf32>
      %cst_29 = arith.constant 0.254829586 : f32
      %46 = vector.broadcast %cst_29 : f32 to vector<16x9xf32>
      %47 = arith.addf %45, %46 : vector<16x9xf32>
      %48 = arith.mulf %47, %34 : vector<16x9xf32>
      %cst_30 = arith.constant 0.000000e+00 : f32
      %49 = vector.broadcast %cst_30 : f32 to vector<16x9xf32>
      %50 = arith.subf %49, %28 : vector<16x9xf32>
      %51 = arith.mulf %50, %28 : vector<16x9xf32>
      %52 = math.exp %51 : vector<16x9xf32>
      %53 = arith.mulf %48, %52 : vector<16x9xf32>
      %cst_31 = arith.constant 1.000000e+00 : f32
      %54 = vector.broadcast %cst_31 : f32 to vector<16x9xf32>
      %55 = arith.subf %54, %53 : vector<16x9xf32>
      %56 = arith.mulf %27, %55 : vector<16x9xf32>
      %cst_32 = arith.constant 1.000000e+00 : f32
      %57 = vector.broadcast %cst_32 : f32 to vector<16x9xf32>
      %58 = arith.addf %57, %56 : vector<16x9xf32>
      %59 = arith.mulf %20, %58 : vector<16x9xf32>
      %c0_33 = arith.constant 0 : index
      %c0_34 = arith.constant 0 : index
      %c0_35 = arith.constant 0 : index
      %60 = vector.load %arg6[%c0_33, %c0_34, %c0_35] : memref<1x16x9xf32, #tpu.memory_space<vmem>>, vector<1x16x9xf32>
      %61 = vector.shape_cast %60 : vector<1x16x9xf32> to vector<16x9xf32>
      %62 = vector.shape_cast %59 : vector<16x9xf32> to vector<1x16x9xf32>
      tpu.vector_store %arg6[%c0_33, %c0_34, %c0_35], %62 {strides = array<i32>} : memref<1x16x9xf32, #tpu.memory_space<vmem>>, vector<1x16x9xf32>,
    } else {
    }
    return
  }
  func.func @transform_0(%arg0: i32, %arg1: i32) -> (i32, i32, i32) {
    %c0_i32 = arith.constant 0 : i32
    %c0_i32_0 = arith.constant 0 : i32
    return %arg0, %c0_i32, %arg1 : i32, i32, i32
  }
  func.func @transform_1(%arg0: i32, %arg1: i32) -> (i32, i32) {
    %c0_i32 = arith.constant 0 : i32
    %c0_i32_0 = arith.constant 0 : i32
    return %arg1, %c0_i32 : i32, i32
  }
  func.func @transform_2(%arg0: i32, %arg1: i32) -> (i32, i32) {
    %c0_i32 = arith.constant 0 : i32
    %c0_i32_0 = arith.constant 0 : i32
    %c0_i32_1 = arith.constant 0 : i32
    return %c0_i32, %c0_i32_0 : i32, i32
  }
  func.func @transform_3(%arg0: i32, %arg1: i32) -> (i32, i32) {
    %c0_i32 = arith.constant 0 : i32
    %c0_i32_0 = arith.constant 0 : i32
    %c0_i32_1 = arith.constant 0 : i32
    return %c0_i32, %c0_i32_0 : i32, i32
  }
  func.func @transform_4(%arg0: i32, %arg1: i32) -> (i32, i32, i32) {
    %c0_i32 = arith.constant 0 : i32
    %c0_i32_0 = arith.constant 0 : i32
    %c0_i32_1 = arith.constant 0 : i32
    return %arg0, %c0_i32, %c0_i32_0 : i32, i32, i32
  }
}

</mosaic_0001>

<llo_original>
// kernel: tpu_custom_call.1
$region0: #{tpu_custom_call.1}
  #allocation0 [shape = 'u32[]', space=smem, size = 0x4, offset = 0x4, fixed_abs, tag = 'smem constant byte address 0x4 - core index']
  #allocation1 [shape = 'u32[144,128]{1,0:T(1,128)}', space=vmem, size = 0x12000, scoped, tag = 'internal scratch']
  #allocation2 [shape = 'f32[8,9]{1,0:T(8,128)}', space=vmem, size = 0x1000, scoped, tag = 'scratch operand']
  %s0 = inlined_call_operand.vmem [shape: f32[2,8,256], index: 0, kind: input, shape index: {}]
  %s1 = inlined_call_operand.vmem [shape: f32[256,9], index: 1, kind: input, shape index: {}]
  %s2 = inlined_call_operand.vmem [shape: f32[16,8], index: 2, kind: input, shape index: {}]
  %s3 = inlined_call_operand.vmem [shape: f32[16,1], index: 3, kind: input, shape index: {}]
  %s4 = inlined_call_operand.vmem [shape: f32[2,16,9], index: 4, kind: output, shape index: {}]
  %s5 = sld [smem:[#allocation0]]
  $region57: #{tpu_custom_call.1} parent=0
    _
  %s7 = ssub.s32 1, %s5
  %s8 = scalar_select 0, %s7, %s5
  loop: start=0, step=1, limit=6
  $region2: #{tpu_custom_call.1} parent=0 // loop_pre_header
    _
  $region3: #{tpu_custom_call.1} parent=0 // loop_header
    %s10 = sphi 0, %s14
    %p11 = scmp.ge.s32.totalorder %s10, 6
    %s17 = sphi 0, %s29
    %s18 = sphi 0, %s25
    %s19 = sphi 0, %s17
    %s20 = sphi 0, %s18
    %s21 = sphi 0, %s19
    %s22 = sphi 0, %s20
    %s34 = sphi 0, %s36
    %s37 = sphi 0, %s34
    %s38 = sphi 0, %s37
    %s54 = sphi 0, %s38
    %s60 = sphi 0, %s62
    %s63 = sphi 0, %s60
    %s64 = sphi 0, %s63
    %s80 = sphi 0, %s64
    %s84 = sphi 0, %s84
    %s86 = sphi 0, %s84
    %s87 = sphi 0, %s86
    %s101 = sphi 0, %s87
    %s105 = sphi 0, %s105
    %s107 = sphi 0, %s105
    %s108 = sphi 0, %s107
    %s122 = sphi 0, %s108
    %s128 = sphi 0, %s130
    %s131 = sphi 0, %s128
    %s132 = sphi 0, %s131
    %s148 = sphi 0, %s132
  $region4: #{tpu_custom_call.1} parent=0 // loop_header_branch
    %13 = sbr.rel (%p11) target = $region8
  $region5: #{tpu_custom_call.1} parent=0 // loop_body
    %s15 = ssub.s32 %s10, 1
    %s16 = ssub.s32 %s10, 2
    %s23 = sadd.s32 1, %s18
    %p24 = scmp.ge.s32.totalorder %s23, 2
    %s25 = scalar_select %p24, 0, %s23
    %s26 = sadd.s32 1, %s17
    %s27 = scalar_select %p24, %s26, %s17
    %p28 = scmp.ge.s32.totalorder %s27, 2
    %s29 = scalar_select %p28, 0, %s27
    %s30 = ssub.s32 %s17, %s29
    %s31 = ssub.s32 %s18, %s25
    %s32 = sor.u32 %s30, %s31
    %p33 = scmp.eq.s32.totalorder %s32, 0
    %s35 = sadd.s32 %s34, 1
    %s36 = scalar_select %p33, %s34, %s35
    %p39 = pneg %p33
    %p40 = scmp.eq.s32.totalorder %s10, 3
    %p41 = por %p39, %p40
    %p42 = scmp.ne.s32.totalorder %s34, %s37
    %p43 = scmp.eq.s32.totalorder %s10, 0
    %p44 = por %p42, %p43
    %p45 = scmp.ne.s32.totalorder %s34, %s37
    %p46 = scmp.eq.s32.totalorder %s15, 3
    %p47 = por %p45, %p46
    %p48 = scmp.ne.s32.totalorder %s37, %s38
    %p49 = scmp.eq.s32.totalorder %s15, 0
    %p50 = por %p48, %p49
    %p51 = scmp.ne.s32.totalorder %s37, %s38
    %p52 = scmp.eq.s32.totalorder %s16, 3
    %p53 = por %p51, %p52
    %p55 = scmp.ne.s32.totalorder %s38, %s54
    %p56 = scmp.eq.s32.totalorder %s16, 0
    %p57 = por %p55, %p56
    %s58 = ssub.s32 %s18, %s25
    %p59 = scmp.eq.s32.totalorder %s58, 0
    %s61 = sadd.s32 %s60, 1
    %s62 = scalar_select %p59, %s60, %s61
    %p65 = pneg %p59
    %p66 = scmp.eq.s32.totalorder %s10, 3
    %p67 = por %p65, %p66
    %p68 = scmp.ne.s32.totalorder %s60, %s63
    %p69 = scmp.eq.s32.totalorder %s10, 0
    %p70 = por %p68, %p69
    %p71 = scmp.ne.s32.totalorder %s60, %s63
    %p72 = scmp.eq.s32.totalorder %s15, 3
    %p73 = por %p71, %p72
    %p74 = scmp.ne.s32.totalorder %s63, %s64
    %p75 = scmp.eq.s32.totalorder %s15, 0
    %p76 = por %p74, %p75
    %p77 = scmp.ne.s32.totalorder %s63, %s64
    %p78 = scmp.eq.s32.totalorder %s16, 3
    %p79 = por %p77, %p78
    %p81 = scmp.ne.s32.totalorder %s64, %s80
    %p82 = scmp.eq.s32.totalorder %s16, 0
    %p83 = por %p81, %p82
    %s85 = sadd.s32 %s84, 1
    %p88 = scmp.eq.s32.totalorder %s10, 3
    %p89 = scmp.ne.s32.totalorder %s84, %s86
    %p90 = scmp.eq.s32.totalorder %s10, 0
    %p91 = por %p89, %p90
    %p92 = scmp.ne.s32.totalorder %s84, %s86
    %p93 = scmp.eq.s32.totalorder %s15, 3
    %p94 = por %p92, %p93
    %p95 = scmp.ne.s32.totalorder %s86, %s87
    %p96 = scmp.eq.s32.totalorder %s15, 0
    %p97 = por %p95, %p96
    %p98 = scmp.ne.s32.totalorder %s86, %s87
    %p99 = scmp.eq.s32.totalorder %s16, 3
    %p100 = por %p98, %p99
    %p102 = scmp.ne.s32.totalorder %s87, %s101
    %p103 = scmp.eq.s32.totalorder %s16, 0
    %p104 = por %p102, %p103
    %s106 = sadd.s32 %s105, 1
    %p109 = scmp.eq.s32.totalorder %s10, 3
    %p110 = scmp.ne.s32.totalorder %s105, %s107
    %p111 = scmp.eq.s32.totalorder %s10, 0
    %p112 = por %p110, %p111
    %p113 = scmp.ne.s32.totalorder %s105, %s107
    %p114 = scmp.eq.s32.totalorder %s15, 3
    %p115 = por %p113, %p114
    %p116 = scmp.ne.s32.totalorder %s107, %s108
    %p117 = scmp.eq.s32.totalorder %s15, 0
    %p118 = por %p116, %p117
    %p119 = scmp.ne.s32.totalorder %s107, %s108
    %p120 = scmp.eq.s32.totalorder %s16, 3
    %p121 = por %p119, %p120
    %p123 = scmp.ne.s32.totalorder %s108, %s122
    %p124 = scmp.eq.s32.totalorder %s16, 0
    %p125 = por %p123, %p124
    %s126 = ssub.s32 %s17, %s29
    %p127 = scmp.eq.s32.totalorder %s126, 0
    %s129 = sadd.s32 %s128, 1
    %s130 = scalar_select %p127, %s128, %s129
    %p133 = pneg %p127
    %p134 = scmp.eq.s32.totalorder %s10, 3
    %p135 = por %p133, %p134
    %p136 = scmp.ne.s32.totalorder %s128, %s131
    %p137 = scmp.eq.s32.totalorder %s10, 0
    %p138 = por %p136, %p137
    %p139 = scmp.ne.s32.totalorder %s128, %s131
    %p140 = scmp.eq.s32.totalorder %s15, 3
    %p141 = por %p139, %p140
    %p142 = scmp.ne.s32.totalorder %s131, %s132
    %p143 = scmp.eq.s32.totalorder %s15, 0
    %p144 = por %p142, %p143
    %p145 = scmp.ne.s32.totalorder %s131, %s132
    %p146 = scmp.eq.s32.totalorder %s16, 3
    %p147 = por %p145, %p146
    %p149 = scmp.ne.s32.totalorder %s132, %s148
    %p150 = scmp.eq.s32.totalorder %s16, 0
    %p151 = por %p149, %p150
    %p152 = scmp.le.s32.totalorder 1, %s10
    %p153 = scmp.lt.s32.totalorder %s10, 5
    %p154 = pnand %p152, %p153
    %p155 = pneg %p154
    // Predicated region
    $region9: #{tpu_custom_call.1} parent=5 // pred_check
      _
    $region10: #{tpu_custom_call.1} parent=5 // pred_check_branch
      %157 = sbr.rel (%p154) target = $region12
    $region11: #{tpu_custom_call.1} parent=5 // pred_region
      %s158 = ssub.s32 %s10, 1
      // Predicated region
      $region13: #{tpu_custom_call.1} parent=11 // pred_check
        %p159 = pneg %p97
      $region14: #{tpu_custom_call.1} parent=11 // pred_check_branch
        %161 = sbr.rel (%p159) target = $region16
      $region15: #{tpu_custom_call.1} parent=11 // pred_region
        _
      $region16: #{tpu_custom_call.1} parent=11 // pred_fallthru
        _
      // Predicated region
      $region17: #{tpu_custom_call.1} parent=11 // pred_check
        %p162 = pneg %p118
      $region18: #{tpu_custom_call.1} parent=11 // pred_check_branch
        %164 = sbr.rel (%p162) target = $region20
      $region19: #{tpu_custom_call.1} parent=11 // pred_region
        _
      $region20: #{tpu_custom_call.1} parent=11 // pred_fallthru
        _
    $region12: #{tpu_custom_call.1} parent=5 // pred_fallthru
      _
    %p165 = scmp.lt.s32.totalorder %s10, 4
    // Predicated region
    $region21: #{tpu_custom_call.1} parent=5 // pred_check
      %p166 = pneg %p165
    $region22: #{tpu_custom_call.1} parent=5 // pred_check_branch
      %168 = sbr.rel (%p166) target = $region24
    $region23: #{tpu_custom_call.1} parent=5 // pred_region
      // Predicated region
      $region25: #{tpu_custom_call.1} parent=23 // pred_check
        %p169 = pneg %p44
      $region26: #{tpu_custom_call.1} parent=23 // pred_check_branch
        %171 = sbr.rel (%p169) target = $region28
      $region27: #{tpu_custom_call.1} parent=23 // pred_region
        %p172 = scmp.lt.s32.totalorder %s17, 1
        %s173 = scalar_select %p172, %s17, 1
        %p174 = scmp.lt.s32.totalorder %s18, 1
        %s175 = scalar_select %p174, %s18, 1
        %s176 = smul.addr %s173, 2
        %s177 = sadd.s32 %s175, %s176
        %s178 = smul.addr %s177, 8
        %s179 = scalar_lea.vmem %s0, %s178
      $region28: #{tpu_custom_call.1} parent=23 // pred_fallthru
        _
      // Predicated region
      $region29: #{tpu_custom_call.1} parent=23 // pred_check
        %p180 = pneg %p70
      $region30: #{tpu_custom_call.1} parent=23 // pred_check_branch
        %182 = sbr.rel (%p180) target = $region32
      $region31: #{tpu_custom_call.1} parent=23 // pred_region
        %s183 = smul.u32 16, %s18
        %p184 = scmp.lt.s32.totalorder %s183, 31
        %s185 = scalar_select %p184, %s183, 31
        %s186 = smul.addr %s185, 8
        %s187 = scalar_lea.vmem %s1, %s186
        %s188 = smul.u32 16, %s18
      $region32: #{tpu_custom_call.1} parent=23 // pred_fallthru
        _
    $region24: #{tpu_custom_call.1} parent=5 // pred_fallthru
      _
    %p189 = scmp.le.s32.totalorder 1, %s10
    %p190 = scmp.lt.s32.totalorder %s10, 5
    %p191 = pnand %p189, %p190
    %p192 = pneg %p191
    // Predicated region
    $region33: #{tpu_custom_call.1} parent=5 // pred_check
      _
    $region34: #{tpu_custom_call.1} parent=5 // pred_check_branch
      %194 = sbr.rel (%p191) target = $region36
    $region35: #{tpu_custom_call.1} parent=5 // pred_region
      %s195 = ssub.s32 %s10, 1
      %p196 = scmp.lt.s32.totalorder %s19, 1
      %s197 = scalar_select %p196, %s19, 1
      %p198 = scmp.lt.s32.totalorder %s20, 1
      %s199 = scalar_select %p198, %s20, 1
      %s200 = smul.addr %s197, 2
      %s201 = sadd.s32 %s199, %s200
      %s202 = smul.addr %s201, 8
      %s203 = scalar_lea.vmem %s0, %s202
      %p204 = pneg %p50
      %p205 = pneg %p47
      %s206 = smul.u32 16, %s20
      %p207 = scmp.lt.s32.totalorder %s206, 31
      %s208 = scalar_select %p207, %s206, 31
      %s209 = smul.addr %s208, 8
      %s210 = scalar_lea.vmem %s1, %s209
      %p211 = pneg %p76
      %p212 = pneg %p73
      %p213 = pneg %p97
      %p214 = pneg %p94
      %p215 = pneg %p118
      %p216 = pneg %p115
      %p217 = pneg %p144
      %p218 = pneg %p141
      %p219 = scmp.lt.s32.totalorder %s19, 1
      %s220 = scalar_select %p219, %s19, 1
      %s221 = smul.addr %s220, 2
      %s222 = smul.addr %s221, 8
      %s223 = scalar_lea.vmem %s4, %s222
      %p224 = scmp.lt.s32.totalorder %s19, 1
      %s225 = scalar_select %p224, %s19, 1
      %p226 = scmp.lt.s32.totalorder %s20, 1
      %s227 = scalar_select %p226, %s20, 1
      %s228 = smul.addr %s225, 2
      %s229 = sadd.s32 %s227, %s228
      %s230 = smul.addr %s229, 8
      %s231 = scalar_lea.vmem %s0, %s230
      %s232 = smul.u32 16, %s20
      %p233 = scmp.lt.s32.totalorder %s232, 31
      %s234 = scalar_select %p233, %s232, 31
      %s235 = smul.addr %s234, 8
      %s236 = scalar_lea.vmem %s1, %s235
      %s237 = smul.u32 16, %s20
      %p238 = scmp.lt.s32.totalorder %s19, 1
      %s239 = scalar_select %p238, %s19, 1
      %s240 = smul.addr %s239, 2
      %s241 = smul.addr %s240, 8
      %s242 = scalar_lea.vmem %s4, %s241
      %p243 = scmp.eq.s32.totalorder %s20, 0
      // Predicated region
      $region37: #{tpu_custom_call.1} parent=35 // pred_check
        %p244 = pneg %p243
      $region38: #{tpu_custom_call.1} parent=35 // pred_check_branch
        %246 = sbr.rel (%p244) target = $region40
      $region39: #{tpu_custom_call.1} parent=35 // pred_region
        %vm247 = vcmask 72704
        %248 = vst.msk [vmem:[#allocation2] sm:$0xff] %vm247, 0.0
      $region40: #{tpu_custom_call.1} parent=35 // pred_fallthru
        _
      %v249 = vld [vmem:[%s231] sm:$0xff]
      %v250 = vld [vmem:[#allocation2] sm:$0xff]
      %v251 = vld [vmem:[%s236] sm:$0xff]
      %v252 = vld [vmem:[%s236 + $0x8] sm:$0xff]
      %v253 = vld [vmem:[%s236 + $0x10] sm:$0xff]
      %v254 = vld [vmem:[%s236 + $0x18] sm:$0xff]
      %v255 = vld [vmem:[%s236 + $0x20] sm:$0xff]
      %v256 = vld [vmem:[%s236 + $0x28] sm:$0xff]
      %v257 = vld [vmem:[%s236 + $0x30] sm:$0xff]
      %v258 = vld [vmem:[%s236 + $0x38] sm:$0xff]
      %v259 = vld [vmem:[%s236 + $0x40] sm:$0xff]
      %v260 = vld [vmem:[%s236 + $0x48] sm:$0xff]
      %v261 = vld [vmem:[%s236 + $0x50] sm:$0xff]
      %v262 = vld [vmem:[%s236 + $0x58] sm:$0xff]
      %v263 = vld [vmem:[%s236 + $0x60] sm:$0xff]
      %v264 = vld [vmem:[%s236 + $0x68] sm:$0xff]
      %v265 = vld [vmem:[%s236 + $0x70] sm:$0xff]
      %v266 = vld [vmem:[%s236 + $0x78] sm:$0xff]
      %267 = vmatprep.subr.mxu0 0.0
      %268 = vmatpush1.msra.mxu0 %v251
      %269 = vmatprep.subr.mxu0 0.0
      %270 = vmatpush1.msra.mxu0 %v252
      %271 = vmatprep.subr.mxu0 0.0
      %272 = vmatpush1.msra.mxu0 %v253
      %273 = vmatprep.subr.mxu0 0.0
      %274 = vmatpush1.msra.mxu0 %v254
      %275 = vmatprep.subr.mxu0 0.0
      %276 = vmatpush1.msra.mxu0 %v255
      %277 = vmatprep.subr.mxu0 0.0
      %278 = vmatpush1.msra.mxu0 %v256
      %279 = vmatprep.subr.mxu0 0.0
      %280 = vmatpush1.msra.mxu0 %v257
      %281 = vmatprep.subr.mxu0 0.0
      %282 = vmatpush1.msra.mxu0 %v258
      %283 = vmatprep.subr.mxu0 0.0
      %284 = vmatpush1.msra.mxu0 %v259
      %285 = vmatprep.subr.mxu0 0.0
      %286 = vmatpush1.msra.mxu0 %v260
      %287 = vmatprep.subr.mxu0 0.0
      %288 = vmatpush1.msra.mxu0 %v261
      %289 = vmatprep.subr.mxu0 0.0
      %290 = vmatpush1.msra.mxu0 %v262
      %291 = vmatprep.subr.mxu0 0.0
      %292 = vmatpush1.msra.mxu0 %v263
      %293 = vmatprep.subr.mxu0 0.0
      %294 = vmatpush1.msra.mxu0 %v264
      %295 = vmatprep.subr.mxu0 0.0
      %296 = vmatpush1.msra.mxu0 %v265
      %297 = vmatprep.subr.mxu0 0.0
      %298 = vmatpush1.msra.mxu0 %v266
      %299 = vmatprep.subr.mxu0 0.0
      %300 = vmatpush1.msra.mxu0 0.0
      %301 = vmatprep.subr.mxu0 0.0
      %302 = vmatpush1.msra.mxu0 0.0
      %303 = vmatprep.subr.mxu0 0.0
      %304 = vmatpush1.msra.mxu0 0.0
      %305 = vmatprep.subr.mxu0 0.0
      %306 = vmatpush1.msra.mxu0 0.0
      %307 = vmatprep.subr.mxu0 0.0
      %308 = vmatpush1.msra.mxu0 0.0
      %309 = vmatprep.subr.mxu0 0.0
      %310 = vmatpush1.msra.mxu0 0.0
      %311 = vmatprep.subr.mxu0 0.0
      %312 = vmatpush1.msra.mxu0 0.0
      %313 = vmatprep.subr.mxu0 0.0
      %314 = vmatpush1.msra.mxu0 0.0
      %315 = vmatprep.subr.mxu0 0.0
      %316 = vmatpush1.msra.mxu0 0.0
      %317 = vmatprep.subr.mxu0 0.0
      %318 = vmatpush1.msra.mxu0 0.0
      %319 = vmatprep.subr.mxu0 0.0
      %320 = vmatpush1.msra.mxu0 0.0
      %321 = vmatprep.subr.mxu0 0.0
      %322 = vmatpush1.msra.mxu0 0.0
      %323 = vmatprep.subr.mxu0 0.0
      %324 = vmatpush1.msra.mxu0 0.0
      %325 = vmatprep.subr.mxu0 0.0
      %326 = vmatpush1.msra.mxu0 0.0
      %327 = vmatprep.subr.mxu0 0.0
      %328 = vmatpush1.msra.mxu0 0.0
      %329 = vmatprep.subr.mxu0 0.0
      %330 = vmatpush1.msra.mxu0 0.0
      %331 = vmatprep.mubr.f32.mxu0 0.0
      %332 = vmatmul.mubr.f32.gmra.mrb[0].mxu0 %v249
      %v333 = vpop.f32.mrb[0].mxu0
      %v334 = vadd.f32 0.0, %v333
      %v335 = vpop.f32.mrb[0].mxu0
      %336 = vdwg.mxu0
      %v337 = vadd.f32 %v250, %v334
      %vm338 = vcmask 72704
      %339 = vst.msk [vmem:[#allocation2] sm:$0xff] %vm338, %v337
      %p340 = scmp.eq.s32.totalorder %s20, 1
      // Predicated region
      $region41: #{tpu_custom_call.1} parent=35 // pred_check
        %p341 = pneg %p340
      $region42: #{tpu_custom_call.1} parent=35 // pred_check_branch
        %343 = sbr.rel (%p341) target = $region44
      $region43: #{tpu_custom_call.1} parent=35 // pred_region
        %v344 = vld [vmem:[%s2] sm:$0xff]
        %v345 = vld [vmem:[%s2 + $0x8] sm:$0xff]
        %v346 = vld [vmem:[#allocation2] sm:$0xff]
        %v347 = vld [vmem:[%s3] sm:$0xff]
        %v348 = vld [vmem:[%s3 + $0x8] sm:$0xff]
        %350 = vset.pattern.permute.xlu0 0
        %351 = vperm.xlu0 %350, %v347
        %v352 = vpop.permute.xlu0 %351
        %355 = vset.pattern.permute.xlu0 0
        %356 = vperm.xlu0 %355, %v348
        %v357 = vpop.permute.xlu0 %356
        %vm359 = vcmask 64512
        %v361 = vsel %vm359, %v344, 0
        %v364 = vsel %vm359, %v345, 0
        %366 = vmatprep.subr.mxu0 0.0
        %367 = vmatpush1.msra.mxu0 %v346
        %368 = vmatprep.subr.mxu0 0.0
        %369 = vmatpush1.msra.mxu0 0.0
        %370 = vmatprep.subr.mxu0 0.0
        %371 = vmatpush1.msra.mxu0 0.0
        %372 = vmatprep.subr.mxu0 0.0
        %373 = vmatpush1.msra.mxu0 0.0
        %374 = vmatprep.subr.mxu0 0.0
        %375 = vmatpush1.msra.mxu0 0.0
        %376 = vmatprep.subr.mxu0 0.0
        %377 = vmatpush1.msra.mxu0 0.0
        %378 = vmatprep.subr.mxu0 0.0
        %379 = vmatpush1.msra.mxu0 0.0
        %380 = vmatprep.subr.mxu0 0.0
        %381 = vmatpush1.msra.mxu0 0.0
        %382 = vmatprep.subr.mxu0 0.0
        %383 = vmatpush1.msra.mxu0 0.0
        %384 = vmatprep.subr.mxu0 0.0
        %385 = vmatpush1.msra.mxu0 0.0
        %386 = vmatprep.subr.mxu0 0.0
        %387 = vmatpush1.msra.mxu0 0.0
        %388 = vmatprep.subr.mxu0 0.0
        %389 = vmatpush1.msra.mxu0 0.0
        %390 = vmatprep.subr.mxu0 0.0
        %391 = vmatpush1.msra.mxu0 0.0
        %392 = vmatprep.subr.mxu0 0.0
        %393 = vmatpush1.msra.mxu0 0.0
        %394 = vmatprep.subr.mxu0 0.0
        %395 = vmatpush1.msra.mxu0 0.0
        %396 = vmatprep.subr.mxu0 0.0
        %397 = vmatpush1.msra.mxu0 0.0
        %398 = vmatprep.subr.mxu0 0.0
        %399 = vmatpush1.msra.mxu0 0.0
        %400 = vmatprep.subr.mxu0 0.0
        %401 = vmatpush1.msra.mxu0 0.0
        %402 = vmatprep.subr.mxu0 0.0
        %403 = vmatpush1.msra.mxu0 0.0
        %404 = vmatprep.subr.mxu0 0.0
        %405 = vmatpush1.msra.mxu0 0.0
        %406 = vmatprep.subr.mxu0 0.0
        %407 = vmatpush1.msra.mxu0 0.0
        %408 = vmatprep.subr.mxu0 0.0
        %409 = vmatpush1.msra.mxu0 0.0
        %410 = vmatprep.subr.mxu0 0.0
        %411 = vmatpush1.msra.mxu0 0.0
        %412 = vmatprep.subr.mxu0 0.0
        %413 = vmatpush1.msra.mxu0 0.0
        %414 = vmatprep.subr.mxu0 0.0
        %415 = vmatpush1.msra.mxu0 0.0
        %416 = vmatprep.subr.mxu0 0.0
        %417 = vmatpush1.msra.mxu0 0.0
        %418 = vmatprep.subr.mxu0 0.0
        %419 = vmatpush1.msra.mxu0 0.0
        %420 = vmatprep.subr.mxu0 0.0
        %421 = vmatpush1.msra.mxu0 0.0
        %422 = vmatprep.subr.mxu0 0.0
        %423 = vmatpush1.msra.mxu0 0.0
        %424 = vmatprep.subr.mxu0 0.0
        %425 = vmatpush1.msra.mxu0 0.0
        %426 = vmatprep.subr.mxu0 0.0
        %427 = vmatpush1.msra.mxu0 0.0
        %428 = vmatprep.subr.mxu0 0.0
        %429 = vmatpush1.msra.mxu0 0.0
        %430 = vmatprep.mubr.f32.mxu0 0.0
        %431 = vmatmul.mubr.f32.gmra.mrb[0].mxu0 %v361
        %v432 = vpop.f32.mrb[0].mxu0
        %v433 = vadd.f32 %v352, %v432
        %v434 = vpop.f32.mrb[0].mxu0
        %435 = vmatprep.mubr.f32.mxu0 0.0
        %436 = vmatmul.mubr.f32.gmra.mrb[0].mxu0 %v364
        %v437 = vpop.f32.mrb[0].mxu0
        %v438 = vadd.f32 %v357, %v437
        %v439 = vpop.f32.mrb[0].mxu0
        %440 = vdwg.mxu0
        %v441 = vmul.f32 %v433, 0.5
        %v442 = vmul.f32 %v438, 0.5
        %v443 = vmul.f32 %v433, 0.70710677
        %v444 = vmul.f32 %v438, 0.70710677
        %vm445 = vcmp.ge.f32.partialorder %v443, 0.0
        %vm446 = vcmp.ge.f32.partialorder %v444, 0.0
        %v447 = vsel %vm445, 1.0, -1.0
        %v448 = vsel %vm446, 1.0, -1.0
        %v449 = vand.u32 2147483647, %v443
        %v450 = vand.u32 2147483647, %v444
        %v451 = vmul.f32 %v449, 0.3275911
        %v452 = vmul.f32 %v450, 0.3275911
        %v453 = vadd.f32 %v451, 1.0
        %v454 = vadd.f32 %v452, 1.0
        %v455 = vrcp.pop %v453
        %v456 = vmul.f32 1.0, %v455
        %v457 = vrcp.pop %v454
        %v458 = vmul.f32 1.0, %v457
        %v459 = vmul.f32 %v456, 1.0614054
        %v460 = vmul.f32 %v458, 1.0614054
        %v461 = vadd.f32 %v459, -1.4531521
        %v462 = vadd.f32 %v460, -1.4531521
        %v463 = vmul.f32 %v461, %v456
        %v464 = vmul.f32 %v462, %v458
        %v465 = vadd.f32 %v463, 1.4214138
        %v466 = vadd.f32 %v464, 1.4214138
        %v467 = vmul.f32 %v465, %v456
        %v468 = vmul.f32 %v466, %v458
        %v469 = vadd.f32 %v467, -0.28449672
        %v470 = vadd.f32 %v468, -0.28449672
        %v471 = vmul.f32 %v469, %v456
        %v472 = vmul.f32 %v470, %v458
        %v473 = vadd.f32 %v471, 0.2548296
        %v474 = vadd.f32 %v472, 0.2548296
        %v475 = vmul.f32 %v473, %v456
        %v476 = vmul.f32 %v474, %v458
        %v477 = vsub.f32 0.0, %v449
        %v478 = vsub.f32 0.0, %v450
        %v479 = vmul.f32 %v477, %v449
        %v480 = vmul.f32 %v478, %v450
        %v481 = vmul.f32 %v479, 1.442695
        %v482 = vpow.pop %v481
        %v483 = vmul.f32 %v480, 1.442695
        %v484 = vpow.pop %v483
        %v485 = vmul.f32 %v475, %v482
        %v486 = vmul.f32 %v476, %v484
        %v487 = vsub.f32 1.0, %v485
        %v488 = vsub.f32 1.0, %v486
        %v489 = vmul.f32 %v447, %v487
        %v490 = vmul.f32 %v448, %v488
        %v491 = vadd.f32 %v489, 1.0
        %v492 = vadd.f32 %v490, 1.0
        %v493 = vmul.f32 %v441, %v491
        %v494 = vmul.f32 %v442, %v492
        %495 = vst.msk [vmem:[%s242] sm:$0xff] %vm338, %v493
        %496 = vst.msk [vmem:[%s242 + $0x8] sm:$0xff] %vm338, %v494
      $region44: #{tpu_custom_call.1} parent=35 // pred_fallthru
        _
      %p497 = scmp.lt.s32.totalorder %s19, 1
      %s498 = scalar_select %p497, %s19, 1
      %s499 = smul.addr %s498, 2
      %s500 = smul.addr %s499, 8
      %s501 = scalar_lea.vmem %s4, %s500
      // Predicated region
      $region45: #{tpu_custom_call.1} parent=35 // pred_check
        %p502 = pneg %p141
      $region46: #{tpu_custom_call.1} parent=35 // pred_check_branch
        %504 = sbr.rel (%p502) target = $region48
      $region47: #{tpu_custom_call.1} parent=35 // pred_region
        _
      $region48: #{tpu_custom_call.1} parent=35 // pred_fallthru
        _
    $region36: #{tpu_custom_call.1} parent=5 // pred_fallthru
      _
    %p505 = scmp.le.s32.totalorder 2, %s10
    // Predicated region
    $region49: #{tpu_custom_call.1} parent=5 // pred_check
      %p506 = pneg %p505
    $region50: #{tpu_custom_call.1} parent=5 // pred_check_branch
      %508 = sbr.rel (%p506) target = $region52
    $region51: #{tpu_custom_call.1} parent=5 // pred_region
      %s509 = ssub.s32 %s10, 2
      // Predicated region
      $region53: #{tpu_custom_call.1} parent=51 // pred_check
        %p510 = pneg %p147
      $region54: #{tpu_custom_call.1} parent=51 // pred_check_branch
        %512 = sbr.rel (%p510) target = $region56
      $region55: #{tpu_custom_call.1} parent=51 // pred_region
        %p513 = scmp.lt.s32.totalorder %s21, 1
        %s514 = scalar_select %p513, %s21, 1
        %s515 = smul.addr %s514, 2
        %s516 = smul.addr %s515, 8
        %s517 = scalar_lea.vmem %s4, %s516
      $region56: #{tpu_custom_call.1} parent=51 // pred_fallthru
        _
    $region52: #{tpu_custom_call.1} parent=5 // pred_fallthru
      _
  $region6: #{tpu_custom_call.1} parent=0 // loop_footer
    %s14 = sadd.s32 1, %s10
  $region7: #{tpu_custom_call.1} parent=0 // loop_footer_branch
    %9 = sbr.rel target = $region3
  $region8: #{tpu_custom_call.1} parent=0 // loop_exit
    _

// kernel: tpu_custom_call.1
$region0: #{tpu_custom_call.1}
  #allocation0 [shape = 'u32[]', space=smem, size = 0x4, offset = 0x4, fixed_abs, tag = 'smem constant byte address 0x4 - core index']
  #allocation1 [shape = 'u32[144,128]{1,0:T(1,128)}', space=vmem, size = 0x12000, scoped, tag = 'internal scratch']
  #allocation2 [shape = 'f32[8,9]{1,0:T(8,128)}', space=vmem, size = 0x1000, scoped, tag = 'scratch operand']
  %s0 = inlined_call_operand.vmem [shape: f32[2,8,256], index: 0, kind: input, shape index: {}]
  %s1 = inlined_call_operand.vmem [shape: f32[256,9], index: 1, kind: input, shape index: {}]
  %s2 = inlined_call_operand.vmem [shape: f32[16,8], index: 2, kind: input, shape index: {}]
  %s3 = inlined_call_operand.vmem [shape: f32[16,1], index: 3, kind: input, shape index: {}]
  %s4 = inlined_call_operand.vmem [shape: f32[2,16,9], index: 4, kind: output, shape index: {}]
  %s5 = sld [smem:[#allocation0]]
  $region57: #{tpu_custom_call.1} parent=0
    _
  %s7 = ssub.s32 1, %s5
  %s8 = scalar_select 0, %s7, %s5
  loop: start=0, step=1, limit=6
  $region2: #{tpu_custom_call.1} parent=0 // loop_pre_header
    _
  $region3: #{tpu_custom_call.1} parent=0 // loop_header
    %s10 = sphi 0, %s14
    %p11 = scmp.ge.s32.totalorder %s10, 6
    %s17 = sphi 0, %s29
    %s18 = sphi 0, %s25
    %s19 = sphi 0, %s17
    %s20 = sphi 0, %s18
    %s21 = sphi 0, %s19
    %s22 = sphi 0, %s20
    %s34 = sphi 0, %s36
    %s37 = sphi 0, %s34
    %s38 = sphi 0, %s37
    %s54 = sphi 0, %s38
    %s60 = sphi 0, %s62
    %s63 = sphi 0, %s60
    %s64 = sphi 0, %s63
    %s80 = sphi 0, %s64
    %s84 = sphi 0, %s84
    %s86 = sphi 0, %s84
    %s87 = sphi 0, %s86
    %s101 = sphi 0, %s87
    %s105 = sphi 0, %s105
    %s107 = sphi 0, %s105
    %s108 = sphi 0, %s107
    %s122 = sphi 0, %s108
    %s128 = sphi 0, %s130
    %s131 = sphi 0, %s128
    %s132 = sphi 0, %s131
    %s148 = sphi 0, %s132
  $region4: #{tpu_custom_call.1} parent=0 // loop_header_branch
    %13 = sbr.rel (%p11) target = $region8
  $region5: #{tpu_custom_call.1} parent=0 // loop_body
    %s15 = ssub.s32 %s10, 1
    %s16 = ssub.s32 %s10, 2
    %s23 = sadd.s32 1, %s18
    %p24 = scmp.ge.s32.totalorder %s23, 2
    %s25 = scalar_select %p24, 0, %s23
    %s26 = sadd.s32 1, %s17
    %s27 = scalar_select %p24, %s26, %s17
    %p28 = scmp.ge.s32.totalorder %s27, 2
    %s29 = scalar_select %p28, 0, %s27
    %s30 = ssub.s32 %s17, %s29
    %s31 = ssub.s32 %s18, %s25
    %s32 = sor.u32 %s30, %s31
    %p33 = scmp.eq.s32.totalorder %s32, 0
    %s35 = sadd.s32 %s34, 1
    %s36 = scalar_select %p33, %s34, %s35
    %p39 = pneg %p33
    %p40 = scmp.eq.s32.totalorder %s10, 3
    %p41 = por %p39, %p40
    %p42 = scmp.ne.s32.totalorder %s34, %s37
    %p43 = scmp.eq.s32.totalorder %s10, 0
    %p44 = por %p42, %p43
    %p45 = scmp.ne.s32.totalorder %s34, %s37
    %p46 = scmp.eq.s32.totalorder %s15, 3
    %p47 = por %p45, %p46
    %p48 = scmp.ne.s32.totalorder %s37, %s38
    %p49 = scmp.eq.s32.totalorder %s15, 0
    %p50 = por %p48, %p49
    %p51 = scmp.ne.s32.totalorder %s37, %s38
    %p52 = scmp.eq.s32.totalorder %s16, 3
    %p53 = por %p51, %p52
    %p55 = scmp.ne.s32.totalorder %s38, %s54
    %p56 = scmp.eq.s32.totalorder %s16, 0
    %p57 = por %p55, %p56
    %s58 = ssub.s32 %s18, %s25
    %p59 = scmp.eq.s32.totalorder %s58, 0
    %s61 = sadd.s32 %s60, 1
    %s62 = scalar_select %p59, %s60, %s61
    %p65 = pneg %p59
    %p66 = scmp.eq.s32.totalorder %s10, 3
    %p67 = por %p65, %p66
    %p68 = scmp.ne.s32.totalorder %s60, %s63
    %p69 = scmp.eq.s32.totalorder %s10, 0
    %p70 = por %p68, %p69
    %p71 = scmp.ne.s32.totalorder %s60, %s63
    %p72 = scmp.eq.s32.totalorder %s15, 3
    %p73 = por %p71, %p72
    %p74 = scmp.ne.s32.totalorder %s63, %s64
    %p75 = scmp.eq.s32.totalorder %s15, 0
    %p76 = por %p74, %p75
    %p77 = scmp.ne.s32.totalorder %s63, %s64
    %p78 = scmp.eq.s32.totalorder %s16, 3
    %p79 = por %p77, %p78
    %p81 = scmp.ne.s32.totalorder %s64, %s80
    %p82 = scmp.eq.s32.totalorder %s16, 0
    %p83 = por %p81, %p82
    %s85 = sadd.s32 %s84, 1
    %p88 = scmp.eq.s32.totalorder %s10, 3
    %p89 = scmp.ne.s32.totalorder %s84, %s86
    %p90 = scmp.eq.s32.totalorder %s10, 0
    %p91 = por %p89, %p90
    %p92 = scmp.ne.s32.totalorder %s84, %s86
    %p93 = scmp.eq.s32.totalorder %s15, 3
    %p94 = por %p92, %p93
    %p95 = scmp.ne.s32.totalorder %s86, %s87
    %p96 = scmp.eq.s32.totalorder %s15, 0
    %p97 = por %p95, %p96
    %p98 = scmp.ne.s32.totalorder %s86, %s87
    %p99 = scmp.eq.s32.totalorder %s16, 3
    %p100 = por %p98, %p99
    %p102 = scmp.ne.s32.totalorder %s87, %s101
    %p103 = scmp.eq.s32.totalorder %s16, 0
    %p104 = por %p102, %p103
    %s106 = sadd.s32 %s105, 1
    %p109 = scmp.eq.s32.totalorder %s10, 3
    %p110 = scmp.ne.s32.totalorder %s105, %s107
    %p111 = scmp.eq.s32.totalorder %s10, 0
    %p112 = por %p110, %p111
    %p113 = scmp.ne.s32.totalorder %s105, %s107
    %p114 = scmp.eq.s32.totalorder %s15, 3
    %p115 = por %p113, %p114
    %p116 = scmp.ne.s32.totalorder %s107, %s108
    %p117 = scmp.eq.s32.totalorder %s15, 0
    %p118 = por %p116, %p117
    %p119 = scmp.ne.s32.totalorder %s107, %s108
    %p120 = scmp.eq.s32.totalorder %s16, 3
    %p121 = por %p119, %p120
    %p123 = scmp.ne.s32.totalorder %s108, %s122
    %p124 = scmp.eq.s32.totalorder %s16, 0
    %p125 = por %p123, %p124
    %s126 = ssub.s32 %s17, %s29
    %p127 = scmp.eq.s32.totalorder %s126, 0
    %s129 = sadd.s32 %s128, 1
    %s130 = scalar_select %p127, %s128, %s129
    %p133 = pneg %p127
    %p134 = scmp.eq.s32.totalorder %s10, 3
    %p135 = por %p133, %p134
    %p136 = scmp.ne.s32.totalorder %s128, %s131
    %p137 = scmp.eq.s32.totalorder %s10, 0
    %p138 = por %p136, %p137
    %p139 = scmp.ne.s32.totalorder %s128, %s131
    %p140 = scmp.eq.s32.totalorder %s15, 3
    %p141 = por %p139, %p140
    %p142 = scmp.ne.s32.totalorder %s131, %s132
    %p143 = scmp.eq.s32.totalorder %s15, 0
    %p144 = por %p142, %p143
    %p145 = scmp.ne.s32.totalorder %s131, %s132
    %p146 = scmp.eq.s32.totalorder %s16, 3
    %p147 = por %p145, %p146
    %p149 = scmp.ne.s32.totalorder %s132, %s148
    %p150 = scmp.eq.s32.totalorder %s16, 0
    %p151 = por %p149, %p150
    %p152 = scmp.le.s32.totalorder 1, %s10
    %p153 = scmp.lt.s32.totalorder %s10, 5
    %p154 = pnand %p152, %p153
    %p155 = pneg %p154
    // Predicated region
    $region9: #{tpu_custom_call.1} parent=5 // pred_check
      _
    $region10: #{tpu_custom_call.1} parent=5 // pred_check_branch
      %157 = sbr.rel (%p154) target = $region12
    $region11: #{tpu_custom_call.1} parent=5 // pred_region
      %s158 = ssub.s32 %s10, 1
      // Predicated region
      $region13: #{tpu_custom_call.1} parent=11 // pred_check
        %p159 = pneg %p97
      $region14: #{tpu_custom_call.1} parent=11 // pred_check_branch
        %161 = sbr.rel (%p159) target = $region16
      $region15: #{tpu_custom_call.1} parent=11 // pred_region
        _
      $region16: #{tpu_custom_call.1} parent=11 // pred_fallthru
        _
      // Predicated region
      $region17: #{tpu_custom_call.1} parent=11 // pred_check
        %p162 = pneg %p118
      $region18: #{tpu_custom_call.1} parent=11 // pred_check_branch
        %164 = sbr.rel (%p162) target = $region20
      $region19: #{tpu_custom_call.1} parent=11 // pred_region
        _
      $region20: #{tpu_custom_call.1} parent=11 // pred_fallthru
        _
    $region12: #{tpu_custom_call.1} parent=5 // pred_fallthru
      _
    %p165 = scmp.lt.s32.totalorder %s10, 4
    // Predicated region
    $region21: #{tpu_custom_call.1} parent=5 // pred_check
      %p166 = pneg %p165
    $region22: #{tpu_custom_call.1} parent=5 // pred_check_branch
      %168 = sbr.rel (%p166) target = $region24
    $region23: #{tpu_custom_call.1} parent=5 // pred_region
      // Predicated region
      $region25: #{tpu_custom_call.1} parent=23 // pred_check
        %p169 = pneg %p44
      $region26: #{tpu_custom_call.1} parent=23 // pred_check_branch
        %171 = sbr.rel (%p169) target = $region28
      $region27: #{tpu_custom_call.1} parent=23 // pred_region
        %p172 = scmp.lt.s32.totalorder %s17, 1
        %s173 = scalar_select %p172, %s17, 1
        %p174 = scmp.lt.s32.totalorder %s18, 1
        %s175 = scalar_select %p174, %s18, 1
        %s176 = smul.addr %s173, 2
        %s177 = sadd.s32 %s175, %s176
        %s178 = smul.addr %s177, 8
        %s179 = scalar_lea.vmem %s0, %s178
      $region28: #{tpu_custom_call.1} parent=23 // pred_fallthru
        _
      // Predicated region
      $region29: #{tpu_custom_call.1} parent=23 // pred_check
        %p180 = pneg %p70
      $region30: #{tpu_custom_call.1} parent=23 // pred_check_branch
        %182 = sbr.rel (%p180) target = $region32
      $region31: #{tpu_custom_call.1} parent=23 // pred_region
        %s183 = smul.u32 16, %s18
        %p184 = scmp.lt.s32.totalorder %s183, 31
        %s185 = scalar_select %p184, %s183, 31
        %s186 = smul.addr %s185, 8
        %s187 = scalar_lea.vmem %s1, %s186
        %s188 = smul.u32 16, %s18
      $region32: #{tpu_custom_call.1} parent=23 // pred_fallthru
        _
    $region24: #{tpu_custom_call.1} parent=5 // pred_fallthru
      _
    %p189 = scmp.le.s32.totalorder 1, %s10
    %p190 = scmp.lt.s32.totalorder %s10, 5
    %p191 = pnand %p189, %p190
    %p192 = pneg %p191
    // Predicated region
    $region33: #{tpu_custom_call.1} parent=5 // pred_check
      _
    $region34: #{tpu_custom_call.1} parent=5 // pred_check_branch
      %194 = sbr.rel (%p191) target = $region36
    $region35: #{tpu_custom_call.1} parent=5 // pred_region
      %s195 = ssub.s32 %s10, 1
      %p196 = scmp.lt.s32.totalorder %s19, 1
      %s197 = scalar_select %p196, %s19, 1
      %p198 = scmp.lt.s32.totalorder %s20, 1
      %s199 = scalar_select %p198, %s20, 1
      %s200 = smul.addr %s197, 2
      %s201 = sadd.s32 %s199, %s200
      %s202 = smul.addr %s201, 8
      %s203 = scalar_lea.vmem %s0, %s202
      %p204 = pneg %p50
      %p205 = pneg %p47
      %s206 = smul.u32 16, %s20
      %p207 = scmp.lt.s32.totalorder %s206, 31
      %s208 = scalar_select %p207, %s206, 31
      %s209 = smul.addr %s208, 8
      %s210 = scalar_lea.vmem %s1, %s209
      %p211 = pneg %p76
      %p212 = pneg %p73
      %p213 = pneg %p97
      %p214 = pneg %p94
      %p215 = pneg %p118
      %p216 = pneg %p115
      %p217 = pneg %p144
      %p218 = pneg %p141
      %p219 = scmp.lt.s32.totalorder %s19, 1
      %s220 = scalar_select %p219, %s19, 1
      %s221 = smul.addr %s220, 2
      %s222 = smul.addr %s221, 8
      %s223 = scalar_lea.vmem %s4, %s222
      %p224 = scmp.lt.s32.totalorder %s19, 1
      %s225 = scalar_select %p224, %s19, 1
      %p226 = scmp.lt.s32.totalorder %s20, 1
      %s227 = scalar_select %p226, %s20, 1
      %s228 = smul.addr %s225, 2
      %s229 = sadd.s32 %s227, %s228
      %s230 = smul.addr %s229, 8
      %s231 = scalar_lea.vmem %s0, %s230
      %s232 = smul.u32 16, %s20
      %p233 = scmp.lt.s32.totalorder %s232, 31
      %s234 = scalar_select %p233, %s232, 31
      %s235 = smul.addr %s234, 8
      %s236 = scalar_lea.vmem %s1, %s235
      %s237 = smul.u32 16, %s20
      %p238 = scmp.lt.s32.totalorder %s19, 1
      %s239 = scalar_select %p238, %s19, 1
      %s240 = smul.addr %s239, 2
      %s241 = smul.addr %s240, 8
      %s242 = scalar_lea.vmem %s4, %s241
      %p243 = scmp.eq.s32.totalorder %s20, 0
      // Predicated region
      $region37: #{tpu_custom_call.1} parent=35 // pred_check
        %p244 = pneg %p243
      $region38: #{tpu_custom_call.1} parent=35 // pred_check_branch
        %246 = sbr.rel (%p244) target = $region40
      $region39: #{tpu_custom_call.1} parent=35 // pred_region
        %vm247 = vcmask 72704
        %248 = vst.msk [vmem:[#allocation2] sm:$0xff] %vm247, 0.0
      $region40: #{tpu_custom_call.1} parent=35 // pred_fallthru
        _
      %v249 = vld [vmem:[%s231] sm:$0xff]
      %v250 = vld [vmem:[#allocation2] sm:$0xff]
      %v251 = vld [vmem:[%s236] sm:$0xff]
      %v252 = vld [vmem:[%s236 + $0x8] sm:$0xff]
      %v253 = vld [vmem:[%s236 + $0x10] sm:$0xff]
      %v254 = vld [vmem:[%s236 + $0x18] sm:$0xff]
      %v255 = vld [vmem:[%s236 + $0x20] sm:$0xff]
      %v256 = vld [vmem:[%s236 + $0x28] sm:$0xff]
      %v257 = vld [vmem:[%s236 + $0x30] sm:$0xff]
      %v258 = vld [vmem:[%s236 + $0x38] sm:$0xff]
      %v259 = vld [vmem:[%s236 + $0x40] sm:$0xff]
      %v260 = vld [vmem:[%s236 + $0x48] sm:$0xff]
      %v261 = vld [vmem:[%s236 + $0x50] sm:$0xff]
      %v262 = vld [vmem:[%s236 + $0x58] sm:$0xff]
      %v263 = vld [vmem:[%s236 + $0x60] sm:$0xff]
      %v264 = vld [vmem:[%s236 + $0x68] sm:$0xff]
      %v265 = vld [vmem:[%s236 + $0x70] sm:$0xff]
      %v266 = vld [vmem:[%s236 + $0x78] sm:$0xff]
      %267 = vmatprep.subr.mxu0 0.0
      %268 = vmatpush1.msra.mxu0 %v251
      %269 = vmatprep.subr.mxu0 0.0
      %270 = vmatpush1.msra.mxu0 %v252
      %271 = vmatprep.subr.mxu0 0.0
      %272 = vmatpush1.msra.mxu0 %v253
      %273 = vmatprep.subr.mxu0 0.0
      %274 = vmatpush1.msra.mxu0 %v254
      %275 = vmatprep.subr.mxu0 0.0
      %276 = vmatpush1.msra.mxu0 %v255
      %277 = vmatprep.subr.mxu0 0.0
      %278 = vmatpush1.msra.mxu0 %v256
      %279 = vmatprep.subr.mxu0 0.0
      %280 = vmatpush1.msra.mxu0 %v257
      %281 = vmatprep.subr.mxu0 0.0
      %282 = vmatpush1.msra.mxu0 %v258
      %283 = vmatprep.subr.mxu0 0.0
      %284 = vmatpush1.msra.mxu0 %v259
      %285 = vmatprep.subr.mxu0 0.0
      %286 = vmatpush1.msra.mxu0 %v260
      %287 = vmatprep.subr.mxu0 0.0
      %288 = vmatpush1.msra.mxu0 %v261
      %289 = vmatprep.subr.mxu0 0.0
      %290 = vmatpush1.msra.mxu0 %v262
      %291 = vmatprep.subr.mxu0 0.0
      %292 = vmatpush1.msra.mxu0 %v263
      %293 = vmatprep.subr.mxu0 0.0
      %294 = vmatpush1.msra.mxu0 %v264
      %295 = vmatprep.subr.mxu0 0.0
      %296 = vmatpush1.msra.mxu0 %v265
      %297 = vmatprep.subr.mxu0 0.0
      %298 = vmatpush1.msra.mxu0 %v266
      %299 = vmatprep.subr.mxu0 0.0
      %300 = vmatpush1.msra.mxu0 0.0
      %301 = vmatprep.subr.mxu0 0.0
      %302 = vmatpush1.msra.mxu0 0.0
      %303 = vmatprep.subr.mxu0 0.0
      %304 = vmatpush1.msra.mxu0 0.0
      %305 = vmatprep.subr.mxu0 0.0
      %306 = vmatpush1.msra.mxu0 0.0
      %307 = vmatprep.subr.mxu0 0.0
      %308 = vmatpush1.msra.mxu0 0.0
      %309 = vmatprep.subr.mxu0 0.0
      %310 = vmatpush1.msra.mxu0 0.0
      %311 = vmatprep.subr.mxu0 0.0
      %312 = vmatpush1.msra.mxu0 0.0
      %313 = vmatprep.subr.mxu0 0.0
      %314 = vmatpush1.msra.mxu0 0.0
      %315 = vmatprep.subr.mxu0 0.0
      %316 = vmatpush1.msra.mxu0 0.0
      %317 = vmatprep.subr.mxu0 0.0
      %318 = vmatpush1.msra.mxu0 0.0
      %319 = vmatprep.subr.mxu0 0.0
      %320 = vmatpush1.msra.mxu0 0.0
      %321 = vmatprep.subr.mxu0 0.0
      %322 = vmatpush1.msra.mxu0 0.0
      %323 = vmatprep.subr.mxu0 0.0
      %324 = vmatpush1.msra.mxu0 0.0
      %325 = vmatprep.subr.mxu0 0.0
      %326 = vmatpush1.msra.mxu0 0.0
      %327 = vmatprep.subr.mxu0 0.0
      %328 = vmatpush1.msra.mxu0 0.0
      %329 = vmatprep.subr.mxu0 0.0
      %330 = vmatpush1.msra.mxu0 0.0
      %331 = vmatprep.mubr.f32.mxu0 0.0
      %332 = vmatmul.mubr.f32.gmra.mrb[0].mxu0 %v249
      %v333 = vpop.f32.mrb[0].mxu0
      %v334 = vadd.f32 0.0, %v333
      %v335 = vpop.f32.mrb[0].mxu0
      %336 = vdwg.mxu0
      %v337 = vadd.f32 %v250, %v334
      %vm338 = vcmask 72704
      %339 = vst.msk [vmem:[#allocation2] sm:$0xff] %vm338, %v337
      %p340 = scmp.eq.s32.totalorder %s20, 1
      // Predicated region
      $region41: #{tpu_custom_call.1} parent=35 // pred_check
        %p341 = pneg %p340
      $region42: #{tpu_custom_call.1} parent=35 // pred_check_branch
        %343 = sbr.rel (%p341) target = $region44
      $region43: #{tpu_custom_call.1} parent=35 // pred_region
        %v344 = vld [vmem:[%s2] sm:$0xff]
        %v345 = vld [vmem:[%s2 + $0x8] sm:$0xff]
        %v346 = vld [vmem:[#allocation2] sm:$0xff]
        %v347 = vld [vmem:[%s3] sm:$0xff]
        %v348 = vld [vmem:[%s3 + $0x8] sm:$0xff]
        %350 = vset.pattern.permute.xlu0 0
        %351 = vperm.xlu0 %350, %v347
        %v352 = vpop.permute.xlu0 %351
        %355 = vset.pattern.permute.xlu0 0
        %356 = vperm.xlu0 %355, %v348
        %v357 = vpop.permute.xlu0 %356
        %vm359 = vcmask 64512
        %v361 = vsel %vm359, %v344, 0
        %v364 = vsel %vm359, %v345, 0
        %366 = vmatprep.subr.mxu0 0.0
        %367 = vmatpush1.msra.mxu0 %v346
        %368 = vmatprep.subr.mxu0 0.0
        %369 = vmatpush1.msra.mxu0 0.0
        %370 = vmatprep.subr.mxu0 0.0
        %371 = vmatpush1.msra.mxu0 0.0
        %372 = vmatprep.subr.mxu0 0.0
        %373 = vmatpush1.msra.mxu0 0.0
        %374 = vmatprep.subr.mxu0 0.0
        %375 = vmatpush1.msra.mxu0 0.0
        %376 = vmatprep.subr.mxu0 0.0
        %377 = vmatpush1.msra.mxu0 0.0
        %378 = vmatprep.subr.mxu0 0.0
        %379 = vmatpush1.msra.mxu0 0.0
        %380 = vmatprep.subr.mxu0 0.0
        %381 = vmatpush1.msra.mxu0 0.0
        %382 = vmatprep.subr.mxu0 0.0
        %383 = vmatpush1.msra.mxu0 0.0
        %384 = vmatprep.subr.mxu0 0.0
        %385 = vmatpush1.msra.mxu0 0.0
        %386 = vmatprep.subr.mxu0 0.0
        %387 = vmatpush1.msra.mxu0 0.0
        %388 = vmatprep.subr.mxu0 0.0
        %389 = vmatpush1.msra.mxu0 0.0
        %390 = vmatprep.subr.mxu0 0.0
        %391 = vmatpush1.msra.mxu0 0.0
        %392 = vmatprep.subr.mxu0 0.0
        %393 = vmatpush1.msra.mxu0 0.0
        %394 = vmatprep.subr.mxu0 0.0
        %395 = vmatpush1.msra.mxu0 0.0
        %396 = vmatprep.subr.mxu0 0.0
        %397 = vmatpush1.msra.mxu0 0.0
        %398 = vmatprep.subr.mxu0 0.0
        %399 = vmatpush1.msra.mxu0 0.0
        %400 = vmatprep.subr.mxu0 0.0
        %401 = vmatpush1.msra.mxu0 0.0
        %402 = vmatprep.subr.mxu0 0.0
        %403 = vmatpush1.msra.mxu0 0.0
        %404 = vmatprep.subr.mxu0 0.0
        %405 = vmatpush1.msra.mxu0 0.0
        %406 = vmatprep.subr.mxu0 0.0
        %407 = vmatpush1.msra.mxu0 0.0
        %408 = vmatprep.subr.mxu0 0.0
        %409 = vmatpush1.msra.mxu0 0.0
        %410 = vmatprep.subr.mxu0 0.0
        %411 = vmatpush1.msra.mxu0 0.0
        %412 = vmatprep.subr.mxu0 0.0
        %413 = vmatpush1.msra.mxu0 0.0
        %414 = vmatprep.subr.mxu0 0.0
        %415 = vmatpush1.msra.mxu0 0.0
        %416 = vmatprep.subr.mxu0 0.0
        %417 = vmatpush1.msra.mxu0 0.0
        %418 = vmatprep.subr.mxu0 0.0
        %419 = vmatpush1.msra.mxu0 0.0
        %420 = vmatprep.subr.mxu0 0.0
        %421 = vmatpush1.msra.mxu0 0.0
        %422 = vmatprep.subr.mxu0 0.0
        %423 = vmatpush1.msra.mxu0 0.0
        %424 = vmatprep.subr.mxu0 0.0
        %425 = vmatpush1.msra.mxu0 0.0
        %426 = vmatprep.subr.mxu0 0.0
        %427 = vmatpush1.msra.mxu0 0.0
        %428 = vmatprep.subr.mxu0 0.0
        %429 = vmatpush1.msra.mxu0 0.0
        %430 = vmatprep.mubr.f32.mxu0 0.0
        %431 = vmatmul.mubr.f32.gmra.mrb[0].mxu0 %v361
        %v432 = vpop.f32.mrb[0].mxu0
        %v433 = vadd.f32 %v352, %v432
        %v434 = vpop.f32.mrb[0].mxu0
        %435 = vmatprep.mubr.f32.mxu0 0.0
        %436 = vmatmul.mubr.f32.gmra.mrb[0].mxu0 %v364
        %v437 = vpop.f32.mrb[0].mxu0
        %v438 = vadd.f32 %v357, %v437
        %v439 = vpop.f32.mrb[0].mxu0
        %440 = vdwg.mxu0
        %v441 = vmul.f32 %v433, 0.5
        %v442 = vmul.f32 %v438, 0.5
        %v443 = vmul.f32 %v433, 0.70710677
        %v444 = vmul.f32 %v438, 0.70710677
        %vm445 = vcmp.ge.f32.partialorder %v443, 0.0
        %vm446 = vcmp.ge.f32.partialorder %v444, 0.0
        %v447 = vsel %vm445, 1.0, -1.0
        %v448 = vsel %vm446, 1.0, -1.0
        %v449 = vand.u32 2147483647, %v443
        %v450 = vand.u32 2147483647, %v444
        %v451 = vmul.f32 %v449, 0.3275911
        %v452 = vmul.f32 %v450, 0.3275911
        %v453 = vadd.f32 %v451, 1.0
        %v454 = vadd.f32 %v452, 1.0
        %v455 = vrcp.pop %v453
        %v456 = vmul.f32 1.0, %v455
        %v457 = vrcp.pop %v454
        %v458 = vmul.f32 1.0, %v457
        %v459 = vmul.f32 %v456, 1.0614054
        %v460 = vmul.f32 %v458, 1.0614054
        %v461 = vadd.f32 %v459, -1.4531521
        %v462 = vadd.f32 %v460, -1.4531521
        %v463 = vmul.f32 %v461, %v456
        %v464 = vmul.f32 %v462, %v458
        %v465 = vadd.f32 %v463, 1.4214138
        %v466 = vadd.f32 %v464, 1.4214138
        %v467 = vmul.f32 %v465, %v456
        %v468 = vmul.f32 %v466, %v458
        %v469 = vadd.f32 %v467, -0.28449672
        %v470 = vadd.f32 %v468, -0.28449672
        %v471 = vmul.f32 %v469, %v456
        %v472 = vmul.f32 %v470, %v458
        %v473 = vadd.f32 %v471, 0.2548296
        %v474 = vadd.f32 %v472, 0.2548296
        %v475 = vmul.f32 %v473, %v456
        %v476 = vmul.f32 %v474, %v458
        %v477 = vsub.f32 0.0, %v449
        %v478 = vsub.f32 0.0, %v450
        %v479 = vmul.f32 %v477, %v449
        %v480 = vmul.f32 %v478, %v450
        %v481 = vmul.f32 %v479, 1.442695
        %v482 = vpow.pop %v481
        %v483 = vmul.f32 %v480, 1.442695
        %v484 = vpow.pop %v483
        %v485 = vmul.f32 %v475, %v482
        %v486 = vmul.f32 %v476, %v484
        %v487 = vsub.f32 1.0, %v485
        %v488 = vsub.f32 1.0, %v486
        %v489 = vmul.f32 %v447, %v487
        %v490 = vmul.f32 %v448, %v488
        %v491 = vadd.f32 %v489, 1.0
        %v492 = vadd.f32 %v490, 1.0
        %v493 = vmul.f32 %v441, %v491
        %v494 = vmul.f32 %v442, %v492
        %495 = vst.msk [vmem:[%s242] sm:$0xff] %vm338, %v493
        %496 = vst.msk [vmem:[%s242 + $0x8] sm:$0xff] %vm338, %v494
      $region44: #{tpu_custom_call.1} parent=35 // pred_fallthru
        _
      %p497 = scmp.lt.s32.totalorder %s19, 1
      %s498 = scalar_select %p497, %s19, 1
      %s499 = smul.addr %s498, 2
      %s500 = smul.addr %s499, 8
      %s501 = scalar_lea.vmem %s4, %s500
      // Predicated region
      $region45: #{tpu_custom_call.1} parent=35 // pred_check
        %p502 = pneg %p141
      $region46: #{tpu_custom_call.1} parent=35 // pred_check_branch
        %504 = sbr.rel (%p502) target = $region48
      $region47: #{tpu_custom_call.1} parent=35 // pred_region
        _
      $region48: #{tpu_custom_call.1} parent=35 // pred_fallthru
        _
    $region36: #{tpu_custom_call.1} parent=5 // pred_fallthru
      _
    %p505 = scmp.le.s32.totalorder 2, %s10
    // Predicated region
    $region49: #{tpu_custom_call.1} parent=5 // pred_check
      %p506 = pneg %p505
    $region50: #{tpu_custom_call.1} parent=5 // pred_check_branch
      %508 = sbr.rel (%p506) target = $region52
    $region51: #{tpu_custom_call.1} parent=5 // pred_region
      %s509 = ssub.s32 %s10, 2
      // Predicated region
      $region53: #{tpu_custom_call.1} parent=51 // pred_check
        %p510 = pneg %p147
      $region54: #{tpu_custom_call.1} parent=51 // pred_check_branch
        %512 = sbr.rel (%p510) target = $region56
      $region55: #{tpu_custom_call.1} parent=51 // pred_region
        %p513 = scmp.lt.s32.totalorder %s21, 1
        %s514 = scalar_select %p513, %s21, 1
        %s515 = smul.addr %s514, 2
        %s516 = smul.addr %s515, 8
        %s517 = scalar_lea.vmem %s4, %s516
      $region56: #{tpu_custom_call.1} parent=51 // pred_fallthru
        _
    $region52: #{tpu_custom_call.1} parent=5 // pred_fallthru
      _
  $region6: #{tpu_custom_call.1} parent=0 // loop_footer
    %s14 = sadd.s32 1, %s10
  $region7: #{tpu_custom_call.1} parent=0 // loop_footer_branch
    %9 = sbr.rel target = $region3
  $region8: #{tpu_custom_call.1} parent=0 // loop_exit
    _

</llo_original>
